<compile_context>
chip_gen: v6e
topology: v6e:2x2x1
jax: 0.10.0
libtpu: 0.0.40
codegen_flags: <defaults>
</compile_context>

<pallas_src>
import functools

import jax
import jax.numpy as jnp
from jax.experimental import pallas as pl
from jax.experimental.pallas import tpu as pltpu

HIDDEN = 128       # fixed by the module: nn.Linear(vocab_size, 128)
LABEL_PAD = 128    # lane-dense padded label width (multiple of 128 lanes)
NEG_INF = -1e30    # mask value for padded label columns


def _round_up(x, m):
    return ((x + m - 1) // m) * m


def _epilogue(h_acc_f32, b1, w2_bf16, b2_padded):
    """bias + ReLU + Linear2 + masked log_softmax.  Elementwise math stays f32
    (v5e VPU/EUP have no bf16); only the MXU dot operands are bf16."""
    h = jnp.maximum(h_acc_f32 + b1, 0.0)                       # Linear1 + clamp(min=0)
    logits = jnp.dot(h.astype(jnp.bfloat16), w2_bf16,
                     preferred_element_type=jnp.float32) + b2_padded
    # Padded label columns carry a -1e30 bias (and zero weights): they never
    # win the max and contribute exactly 0 to the exp-sum.
    m = jnp.max(logits, axis=1, keepdims=True)
    shifted = logits - m
    lse = jnp.log(jnp.sum(jnp.exp(shifted), axis=1, keepdims=True))
    return shifted - lse


def _single_block_kernel(x_ref, w1_ref, b1_ref, w2_ref, b2_ref, out_ref):
    # Whole problem resident in VMEM: one step, no reduction grid axis.
    h_acc = jnp.dot(x_ref[...].astype(jnp.bfloat16), w1_ref[...],
                    preferred_element_type=jnp.float32)
    out_ref[...] = _epilogue(h_acc, b1_ref[...], w2_ref[...], b2_ref[...])


def _tiled_kernel(x_ref, w1_ref, b1_ref, w2_ref, b2_ref, out_ref, acc_ref,
                  *, tk, w1_resident):
    # Grid: (batch_tiles, k_tiles); axis 1 (vocab) is the reduction axis.
    k = pl.program_id(1)

    @pl.when(k == 0)
    def _():
        acc_ref[...] = jnp.zeros_like(acc_ref)

    if w1_resident:
        # Full W1 is VMEM-resident (constant index_map); take the K slice here.
        start = pl.multiple_of(k * tk, tk)
        w1_tile = w1_ref[pl.ds(start, tk), :]
    else:
        w1_tile = w1_ref[...]

    # In-kernel bf16 cast of the f32 x tile (VPU filler under the HBM-bound
    # stream); f32 accumulate into resident VMEM scratch.
    acc_ref[...] += jnp.dot(x_ref[...].astype(jnp.bfloat16), w1_tile,
                            preferred_element_type=jnp.float32)

    @pl.when(k == pl.num_programs(1) - 1)
    def _():
        out_ref[...] = _epilogue(acc_ref[...], b1_ref[...], w2_ref[...], b2_ref[...])


def simple_text_classifier(feature_vec, w1, b1, w2, b2, *,
                           force_tiled=False, tb=None, tk=None, w1_resident=None):
    """feature_vec: (B, vocab_size) f32; w1: (vocab_size, 128); b1: (128,);
    w2: (128, num_labels); b2: (num_labels,). Returns log_softmax (B, num_labels) f32.

    tb / tk / w1_resident / force_tiled are optional overrides (testing/tuning);
    by default tiling adapts to the problem size and the chip's VMEM capacity.
    """
    B, V = feature_vec.shape
    assert w1.shape == (V, HIDDEN), "hidden size is fixed to 128 by the module"
    L = int(w2.shape[1])
    assert L <= LABEL_PAD, "num_labels > 128 would need label tiling"

    x = feature_vec.astype(jnp.float32)
    b1_2d = b1.astype(jnp.float32).reshape(1, HIDDEN)
    # Lane-dense label dim: zero-pad W2 columns; padded bias entries mask the logits.
    w2_p = jnp.zeros((HIDDEN, LABEL_PAD), jnp.bfloat16).at[:, :L].set(w2.astype(jnp.bfloat16))
    b2_p = jnp.full((1, LABEL_PAD), NEG_INF, jnp.float32).at[0, :L].set(b2.astype(jnp.float32))

    # Trace-time VMEM capacity query (64 MiB on v7x, 128 MiB on v5e/v6e).
    try:
        vmem_cap = int(pltpu.get_tpu_info().vmem_capacity_bytes)
    except Exception:
        vmem_cap = 64 * 1024 * 1024
    vmem_budget = int(0.6 * vmem_cap)                       # residency decisions
    vmem_limit = min(int(0.75 * vmem_cap), 100 * 1024 * 1024)

    # ---------------- tiny-problem fast path: one block, no grid overhead --------------
    small_bytes = B * V * 4 + V * HIDDEN * 2 + B * LABEL_PAD * 4
    if (not force_tiled) and small_bytes <= 8 * 1024 * 1024:
        w1_bf = w1.astype(jnp.bfloat16)
        cost = pl.CostEstimate(
            flops=2 * B * V * HIDDEN + 2 * B * HIDDEN * LABEL_PAD,
            transcendentals=B * LABEL_PAD + B,
            bytes_accessed=small_bytes + HIDDEN * LABEL_PAD * 2 + HIDDEN * 4 + LABEL_PAD * 4,
        )
        out = pl.pallas_call(
            _single_block_kernel,
            out_shape=jax.ShapeDtypeStruct((B, LABEL_PAD), jnp.float32),
            grid=(1,),
            in_specs=[
                pl.BlockSpec((B, V), lambda i: (0, 0)),               # x (full, f32)
                pl.BlockSpec((V, HIDDEN), lambda i: (0, 0)),          # W1 (full, bf16)
                pl.BlockSpec((1, HIDDEN), lambda i: (0, 0)),          # b1
                pl.BlockSpec((HIDDEN, LABEL_PAD), lambda i: (0, 0)),  # W2 (padded)
                pl.BlockSpec((1, LABEL_PAD), lambda i: (0, 0)),       # b2 (padded mask)
            ],
            out_specs=pl.BlockSpec((B, LABEL_PAD), lambda i: (0, 0)),
            compiler_params=pltpu.CompilerParams(
                dimension_semantics=("arbitrary",),
                vmem_limit_bytes=vmem_limit),
            cost_estimate=cost,
        )(x, w1_bf, b1_2d, w2_p, b2_p)
        return out[:, :L]

    # ---------------- tiled path ----------------
    b_aligned = _round_up(B, 8)
    v_aligned = _round_up(V, 128)

    if tb is None:
        n_btiles = max(1, -(-b_aligned // 512))          # ~512-row batch tiles
        if b_aligned > 256 and n_btiles == 1:
            n_btiles = 2                                  # keep both v7x TCs busy
        if n_btiles > 1 and n_btiles % 2:
            n_btiles += 1                                 # even split across 2 TCs
        tb = _round_up(-(-b_aligned // n_btiles), 8)
    else:
        assert tb % 8 == 0, "tb must be a multiple of 8"
    n_btiles = -(-b_aligned // tb)
    Bp = n_btiles * tb

    if tk is None:
        tk = min(2048, v_aligned)
    else:
        assert tk % 128 == 0, "tk must be a multiple of 128"
        tk = min(tk, v_aligned)
    n_ktiles = -(-v_aligned // tk)
    Vp = n_ktiles * tk

    # VMEM footprint of the streamed pieces (f32 x tiles, double-buffered).
    stream_bytes = (2 * tb * tk * 4 + 2 * tb * LABEL_PAD * 4 + tb * HIDDEN * 4
                    + 2 * HIDDEN * LABEL_PAD * 2 + 4096)
    w1_bytes = Vp * HIDDEN * 2
    if w1_resident is None:
        # Only worth holding W1 resident when it would otherwise be re-streamed
        # (more than one batch tile) and it conservatively (2x for buffering)
        # fits beside the streamed tiles.  v7x (64 MiB) naturally falls back
        # to streaming for large vocabularies; v5e/v6e (128 MiB) keep it resident.
        w1_resident = (n_btiles > 1) and (2 * w1_bytes + stream_bytes <= vmem_budget)

    # Zero-pad x (f32) / W1 only when the tiling requires it; zero rows/cols
    # contribute nothing to the matmul.
    if (Bp, Vp) != (B, V):
        x = jnp.pad(x, ((0, Bp - B), (0, Vp - V)))
    w1_p = jnp.zeros((Vp, HIDDEN), jnp.bfloat16).at[:V, :].set(w1.astype(jnp.bfloat16))

    if w1_resident:
        w1_spec = pl.BlockSpec((Vp, HIDDEN), lambda i, k: (0, 0))    # resident, sliced in-kernel
        w1_hbm_reads = w1_bytes
    else:
        w1_spec = pl.BlockSpec((tk, HIDDEN), lambda i, k: (k, 0))    # streamed per K tile
        w1_hbm_reads = n_btiles * w1_bytes                           # re-read once per batch tile

    cost = pl.CostEstimate(
        flops=2 * Bp * Vp * HIDDEN + 2 * Bp * HIDDEN * LABEL_PAD,
        transcendentals=Bp * LABEL_PAD + Bp,
        bytes_accessed=(Bp * Vp * 4 + w1_hbm_reads + HIDDEN * LABEL_PAD * 2
                        + HIDDEN * 4 + LABEL_PAD * 4 + Bp * LABEL_PAD * 4),
    )

    kernel = functools.partial(_tiled_kernel, tk=tk, w1_resident=bool(w1_resident))

    out_padded = pl.pallas_call(
        kernel,
        out_shape=jax.ShapeDtypeStruct((Bp, LABEL_PAD), jnp.float32),
        grid_spec=pltpu.PrefetchScalarGridSpec(
            num_scalar_prefetch=0,
            grid=(n_btiles, n_ktiles),
            in_specs=[
                pl.BlockSpec((tb, tk), lambda i, k: (i, k)),              # x tile (streamed, f32)
                w1_spec,                                                  # W1 (resident or streamed)
                pl.BlockSpec((1, HIDDEN), lambda i, k: (0, 0)),           # b1 (resident)
                pl.BlockSpec((HIDDEN, LABEL_PAD), lambda i, k: (0, 0)),   # W2 (resident, padded)
                pl.BlockSpec((1, LABEL_PAD), lambda i, k: (0, 0)),        # b2 (resident, padded mask)
            ],
            out_specs=pl.BlockSpec((tb, LABEL_PAD), lambda i, k: (i, 0)),
            scratch_shapes=[pltpu.VMEM((tb, HIDDEN), jnp.float32)],       # f32 hidden accumulator
        ),
        compiler_params=pltpu.CompilerParams(
            dimension_semantics=("parallel", "arbitrary"),
            vmem_limit_bytes=vmem_limit),
        cost_estimate=cost,
    )(x, w1_p, b1_2d, w2_p, b2_p)

    return out_padded[:B, :L]


def _reference(feature_vec, w1, b1, w2, b2):
    h = jnp.maximum(feature_vec @ w1 + b1, 0.0)
    logits = h @ w2 + b2
    return jax.nn.log_softmax(logits, axis=1)


if __name__ == "__main__":
    # Small shapes consistent with the module: hidden=128 is fixed, num_labels=4
    # (padded to 128 lanes inside the wrapper), batch=256, vocab=512.
    B, VOCAB, NUM_LABELS = 256, 512, 4

    key = jax.random.PRNGKey(0)
    kx, k1, k2, k3, k4 = jax.random.split(key, 5)

    # Deterministic parameter init (PyTorch-Linear-like uniform bounds).
    bound1 = 1.0 / (VOCAB ** 0.5)
    bound2 = 1.0 / (HIDDEN ** 0.5)
    w1 = jax.random.uniform(k1, (VOCAB, HIDDEN), jnp.float32, -bound1, bound1)
    b1 = jax.random.uniform(k2, (HIDDEN,), jnp.float32, -bound1, bound1)
    w2 = jax.random.uniform(k3, (HIDDEN, NUM_LABELS), jnp.float32, -bound2, bound2)
    b2 = jax.random.uniform(k4, (NUM_LABELS,), jnp.float32, -bound2, bound2)

    # Bag-of-words-style non-negative feature vector.
    feature_vec = jax.random.uniform(kx, (B, VOCAB), jnp.float32, 0.0, 2.0)

    ref = _reference(feature_vec, w1, b1, w2, b2)

    # 1) Auto path: tiny problem -> single-block kernel (no grid / no padding).
    out_single = jax.block_until_ready(
        simple_text_classifier(feature_vec, w1, b1, w2, b2))
    # 2) Tiled path with streamed W1 (exercises the 2-D grid + accumulator).
    out_stream = jax.block_until_ready(
        simple_text_classifier(feature_vec, w1, b1, w2, b2,
                               force_tiled=True, tb=128, tk=256, w1_resident=False))
    # 3) Tiled path with VMEM-resident W1 (exercises the in-kernel pl.ds slice).
    out_resid = jax.block_until_ready(
        simple_text_classifier(feature_vec, w1, b1, w2, b2,
                               force_tiled=True, tb=128, tk=256, w1_resident=True))

    for out in (out_single, out_stream, out_resid):
        assert out.shape == (B, NUM_LABELS)
        # bf16 matmul operands vs f32 reference -> slightly looser tolerance.
        # (bf16 cast of counts > ~256 loses integer precision; acceptable here.)
        assert jnp.allclose(out, ref, atol=2e-2, rtol=2e-2), "mismatch vs reference"

    # TODO(synk): return_all_layers=True path (hidden1/logits extras) not exposed; only the
    # default log_softmax output is implemented.
    print("KERNEL_OK")
</pallas_src>

<mosaic_0001>
module attributes {stable_mosaic.version = 11 : i64} {
  func.func @_single_block_kernel(%arg0: i32, %arg1: memref<256x512xf32, #tpu.memory_space<vmem>>, %arg2: memref<512x128xbf16, #tpu.memory_space<vmem>>, %arg3: memref<1x128xf32, #tpu.memory_space<vmem>>, %arg4: memref<128x128xbf16, #tpu.memory_space<vmem>>, %arg5: memref<1x128xf32, #tpu.memory_space<vmem>>, %arg6: memref<256x128xf32, #tpu.memory_space<vmem>>) attributes {dimension_semantics = [#tpu.dimension_semantics<arbitrary>], iteration_bounds = array<i64: 1>, scalar_prefetch = 0 : i64, scratch_operands = 0 : i64, tpu.core_type = #tpu.core_type<tc>, window_params = [{pipeline_mode = #tpu.pipeline_mode<synchronous>, transform_indices = @transform_0, window_bounds = array<i64: 256, 512>}, {pipeline_mode = #tpu.pipeline_mode<synchronous>, transform_indices = @transform_1, window_bounds = array<i64: 512, 128>}, {pipeline_mode = #tpu.pipeline_mode<synchronous>, transform_indices = @transform_2, window_bounds = array<i64: 1, 128>}, {pipeline_mode = #tpu.pipeline_mode<synchronous>, transform_indices = @transform_3, window_bounds = array<i64: 128, 128>}, {pipeline_mode = #tpu.pipeline_mode<synchronous>, transform_indices = @transform_4, window_bounds = array<i64: 1, 128>}, {pipeline_mode = #tpu.pipeline_mode<synchronous>, transform_indices = @transform_5, window_bounds = array<i64: 256, 128>}]} {
    %c0 = arith.constant 0 : index
    %c0_0 = arith.constant 0 : index
    %0 = vector.load %arg1[%c0, %c0_0] : memref<256x512xf32, #tpu.memory_space<vmem>>, vector<256x512xf32>
    %1 = arith.truncf %0 : vector<256x512xf32> to vector<256x512xbf16>
    %c0_1 = arith.constant 0 : index
    %c0_2 = arith.constant 0 : index
    %2 = vector.load %arg2[%c0_1, %c0_2] : memref<512x128xbf16, #tpu.memory_space<vmem>>, vector<512x128xbf16>
    %cst = arith.constant dense<0.000000e+00> : vector<256x128xf32>
    %3 = tpu.matmul %1, %2, %cst {dimension_numbers = #tpu.dot_dimension_numbers<[1], [0], [0], [1], [0, 0, 1, 1], [], []>} : vector<256x512xbf16>, vector<512x128xbf16>, vector<256x128xf32> -> vector<256x128xf32>
    %c0_3 = arith.constant 0 : index
    %c0_4 = arith.constant 0 : index
    %4 = vector.load %arg3[%c0_3, %c0_4] : memref<1x128xf32, #tpu.memory_space<vmem>>, vector<1x128xf32>
    %c0_5 = arith.constant 0 : index
    %c0_6 = arith.constant 0 : index
    %5 = vector.load %arg4[%c0_5, %c0_6] : memref<128x128xbf16, #tpu.memory_space<vmem>>, vector<128x128xbf16>
    %c0_7 = arith.constant 0 : index
    %c0_8 = arith.constant 0 : index
    %6 = vector.load %arg5[%c0_7, %c0_8] : memref<1x128xf32, #tpu.memory_space<vmem>>, vector<1x128xf32>
    %7 = vector.broadcast %4 : vector<1x128xf32> to vector<256x128xf32>
    %8 = arith.addf %3, %7 : vector<256x128xf32>
    %cst_9 = arith.constant 0.000000e+00 : f32
    %9 = vector.broadcast %cst_9 : f32 to vector<256x128xf32>
    %10 = arith.maximumf %8, %9 : vector<256x128xf32>
    %11 = arith.truncf %10 : vector<256x128xf32> to vector<256x128xbf16>
    %cst_10 = arith.constant dense<0.000000e+00> : vector<256x128xf32>
    %12 = tpu.matmul %11, %5, %cst_10 {dimension_numbers = #tpu.dot_dimension_numbers<[1], [0], [0], [1], [0, 0, 1, 1], [], []>} : vector<256x128xbf16>, vector<128x128xbf16>, vector<256x128xf32> -> vector<256x128xf32>
    %13 = vector.broadcast %6 : vector<1x128xf32> to vector<256x128xf32>
    %14 = arith.addf %12, %13 : vector<256x128xf32>
    %cst_11 = arith.constant dense<0xFF800000> : vector<256xf32>
    %15 = vector.multi_reduction <maximumf>, %14, %cst_11 [1] : vector<256x128xf32> to vector<256xf32>
    %16 = vector.shape_cast %15 : vector<256xf32> to vector<256x1xf32>
    %17 = vector.broadcast %16 : vector<256x1xf32> to vector<256x128xf32>
    %18 = arith.subf %14, %17 : vector<256x128xf32>
    %19 = math.exp %18 : vector<256x128xf32>
    %cst_12 = arith.constant dense<0.000000e+00> : vector<256xf32>
    %20 = vector.multi_reduction <add>, %19, %cst_12 [1] : vector<256x128xf32> to vector<256xf32>
    %21 = vector.shape_cast %20 : vector<256xf32> to vector<256x1xf32>
    %22 = math.log %21 : vector<256x1xf32>
    %23 = vector.broadcast %22 : vector<256x1xf32> to vector<256x128xf32>
    %24 = arith.subf %18, %23 : vector<256x128xf32>
    %c0_13 = arith.constant 0 : index
    %c0_14 = arith.constant 0 : index
    %25 = vector.load %arg6[%c0_13, %c0_14] : memref<256x128xf32, #tpu.memory_space<vmem>>, vector<256x128xf32>
    tpu.vector_store %arg6[%c0_13, %c0_14], %24 {strides = array<i32>} : memref<256x128xf32, #tpu.memory_space<vmem>>, vector<256x128xf32>,
    return
  }
  func.func @transform_0(%arg0: i32) -> (i32, i32) {
    %c0_i32 = arith.constant 0 : i32
    %c0_i32_0 = arith.constant 0 : i32
    %c0_i32_1 = arith.constant 0 : i32
    return %c0_i32, %c0_i32_0 : i32, i32
  }
  func.func @transform_1(%arg0: i32) -> (i32, i32) {
    %c0_i32 = arith.constant 0 : i32
    %c0_i32_0 = arith.constant 0 : i32
    %c0_i32_1 = arith.constant 0 : i32
    return %c0_i32, %c0_i32_0 : i32, i32
  }
  func.func @transform_2(%arg0: i32) -> (i32, i32) {
    %c0_i32 = arith.constant 0 : i32
    %c0_i32_0 = arith.constant 0 : i32
    %c0_i32_1 = arith.constant 0 : i32
    return %c0_i32, %c0_i32_0 : i32, i32
  }
  func.func @transform_3(%arg0: i32) -> (i32, i32) {
    %c0_i32 = arith.constant 0 : i32
    %c0_i32_0 = arith.constant 0 : i32
    %c0_i32_1 = arith.constant 0 : i32
    return %c0_i32, %c0_i32_0 : i32, i32
  }
  func.func @transform_4(%arg0: i32) -> (i32, i32) {
    %c0_i32 = arith.constant 0 : i32
    %c0_i32_0 = arith.constant 0 : i32
    %c0_i32_1 = arith.constant 0 : i32
    return %c0_i32, %c0_i32_0 : i32, i32
  }
  func.func @transform_5(%arg0: i32) -> (i32, i32) {
    %c0_i32 = arith.constant 0 : i32
    %c0_i32_0 = arith.constant 0 : i32
    %c0_i32_1 = arith.constant 0 : i32
    return %c0_i32, %c0_i32_0 : i32, i32
  }
}

</mosaic_0001>

<llo_original>
// kernel: tpu_custom_call.1
$region0: #{tpu_custom_call.1}
  #allocation0 [shape = 'u32[]', space=smem, size = 0x4, offset = 0x4, fixed_abs, tag = 'smem constant byte address 0x4 - core index']
  #allocation1 [shape = 'u32[144,128]{1,0:T(1,128)}', space=vmem, size = 0x12000, scoped, tag = 'internal scratch']
  %s0 = inlined_call_operand.hbm [shape: f32[256,512], index: 0, kind: input, shape index: {}]
  %s1 = inlined_call_operand.hbm [shape: bf16[512,128], index: 1, kind: input, shape index: {}]
  %s2 = inlined_call_operand.vmem [shape: f32[1,128], index: 2, kind: input, shape index: {}]
  %s3 = inlined_call_operand.hbm [shape: bf16[128,128], index: 3, kind: input, shape index: {}]
  %s4 = inlined_call_operand.vmem [shape: f32[1,128], index: 4, kind: input, shape index: {}]
  %s5 = inlined_call_operand.hbm [shape: f32[256,128], index: 5, kind: output, shape index: {}]
  %s6 = sld [smem:[#allocation0]]
  $region42: #{tpu_custom_call.1} parent=0
    _
  %s8 = ssub.s32 1, %s6
  %s9 = scalar_select 0, %s8, %s6
  $region1: #{tpu_custom_call.1} parent=0
    #allocation2 [shape = 'u8[524288]{0}', space=vmem, size = 0x80000, scoped, tag = 'input window, operand 0, single buffered']
    #allocation3 [shape = 's32[1]{0}', space=sflag, size = 0x4, scoped, tag = 'scoped memory for tpu_custom_call.1']
    #allocation4 [shape = 's32[1]{0}', space=sflag, size = 0x4, scoped, tag = 'scoped memory for tpu_custom_call.1']
    #allocation5 [shape = 'u8[131072]{0}', space=vmem, size = 0x20000, scoped, tag = 'input window, operand 1, single buffered']
    #allocation6 [shape = 's32[1]{0}', space=sflag, size = 0x4, scoped, tag = 'scoped memory for tpu_custom_call.1']
    #allocation7 [shape = 'u8[32768]{0}', space=vmem, size = 0x8000, scoped, tag = 'input window, operand 3, single buffered']
    #allocation8 [shape = 'u8[131072]{0}', space=vmem, size = 0x20000, scoped, tag = 'output window, operand 0, single buffered']
    %10 = vsyncpa [#allocation3], 0
    %11 = vsyncpa [#allocation6], 0
    %12 = vsyncpa [#allocation4], 0
    // Predicated region
    $region2: #{tpu_custom_call.1} parent=1 // pred_check
      _
    $region3: #{tpu_custom_call.1} parent=1 // pred_check_branch
      %14 = sbr.rel (0) target = $region5
    $region4: #{tpu_custom_call.1} parent=1 // pred_region
      %s16 = ssub.s32 16384, 16384
      %17 = vsyncadd [#allocation3], %s16
      %s18 = sshll.u32 [#allocation2], 4
      %s19 = int_to_ptr.vmem [resolvable:$true] %s18
      %24 = dma.hbm_to_vmem [thread:$0]  %s0, 16384, %s19, [#allocation3], 512, 512, 32
    $region5: #{tpu_custom_call.1} parent=1 // pred_fallthru
      _
    // Predicated region
    $region6: #{tpu_custom_call.1} parent=1 // pred_check
      _
    $region7: #{tpu_custom_call.1} parent=1 // pred_check_branch
      %26 = sbr.rel (0) target = $region9
    $region8: #{tpu_custom_call.1} parent=1 // pred_region
      %s28 = ssub.s32 4096, 4096
      %29 = vsyncadd [#allocation6], %s28
      %s30 = sshll.u32 [#allocation5], 4
      %s31 = int_to_ptr.vmem [resolvable:$true] %s30
      %36 = dma.hbm_to_vmem [thread:$0]  %s1, 4096, %s31, [#allocation6], 64, 64, 4
    $region9: #{tpu_custom_call.1} parent=1 // pred_fallthru
      _
    // Predicated region
    $region10: #{tpu_custom_call.1} parent=1 // pred_check
      _
    $region11: #{tpu_custom_call.1} parent=1 // pred_check_branch
      %38 = sbr.rel (0) target = $region13
    $region12: #{tpu_custom_call.1} parent=1 // pred_region
      _
    $region13: #{tpu_custom_call.1} parent=1 // pred_fallthru
      _
    // Predicated region
    $region14: #{tpu_custom_call.1} parent=1 // pred_check
      _
    $region15: #{tpu_custom_call.1} parent=1 // pred_check_branch
      %40 = sbr.rel (0) target = $region17
    $region16: #{tpu_custom_call.1} parent=1 // pred_region
      %s42 = ssub.s32 1024, 1024
      %43 = vsyncadd [#allocation6], %s42
      %s44 = sshll.u32 [#allocation7], 4
      %s45 = int_to_ptr.vmem [resolvable:$true] %s44
      %50 = dma.hbm_to_vmem [thread:$0]  %s3, 1024, %s45, [#allocation6], 64, 64, 4
    $region17: #{tpu_custom_call.1} parent=1 // pred_fallthru
      _
    // Predicated region
    $region18: #{tpu_custom_call.1} parent=1 // pred_check
      _
    $region19: #{tpu_custom_call.1} parent=1 // pred_check_branch
      %52 = sbr.rel (0) target = $region21
    $region20: #{tpu_custom_call.1} parent=1 // pred_region
      _
    $region21: #{tpu_custom_call.1} parent=1 // pred_fallthru
      _
    // Predicated region
    $region22: #{tpu_custom_call.1} parent=1 // pred_check
      _
    $region23: #{tpu_custom_call.1} parent=1 // pred_check_branch
      %54 = sbr.rel (0) target = $region25
    $region24: #{tpu_custom_call.1} parent=1 // pred_region
      %55 = dma.done [#allocation3], 16384
    $region25: #{tpu_custom_call.1} parent=1 // pred_fallthru
      _
    // Predicated region
    $region26: #{tpu_custom_call.1} parent=1 // pred_check
      _
    $region27: #{tpu_custom_call.1} parent=1 // pred_check_branch
      %57 = sbr.rel (0) target = $region29
    $region28: #{tpu_custom_call.1} parent=1 // pred_region
      %58 = dma.done [#allocation6], 4096
    $region29: #{tpu_custom_call.1} parent=1 // pred_fallthru
      _
    // Predicated region
    $region30: #{tpu_custom_call.1} parent=1 // pred_check
      _
    $region31: #{tpu_custom_call.1} parent=1 // pred_check_branch
      %60 = sbr.rel (0) target = $region33
    $region32: #{tpu_custom_call.1} parent=1 // pred_region
      %61 = dma.done [#allocation6], 1024
    $region33: #{tpu_custom_call.1} parent=1 // pred_fallthru
      _
    %v63 = vld [vmem:[#allocation2] sm:$0xff]
    %v64 = vld [vmem:[#allocation2 + $0x8] sm:$0xff]
    %v65 = vld [vmem:[#allocation2 + $0x10] sm:$0xff]
    %v66 = vld [vmem:[#allocation2 + $0x18] sm:$0xff]
    %v67 = vld [vmem:[#allocation2 + $0x20] sm:$0xff]
    %v68 = vld [vmem:[#allocation2 + $0x28] sm:$0xff]
    %v69 = vld [vmem:[#allocation2 + $0x30] sm:$0xff]
    %v70 = vld [vmem:[#allocation2 + $0x38] sm:$0xff]
    %v71 = vld [vmem:[#allocation2 + $0x40] sm:$0xff]
    %v72 = vld [vmem:[#allocation2 + $0x48] sm:$0xff]
    %v73 = vld [vmem:[#allocation2 + $0x50] sm:$0xff]
    %v74 = vld [vmem:[#allocation2 + $0x58] sm:$0xff]
    %v75 = vld [vmem:[#allocation2 + $0x60] sm:$0xff]
    %v76 = vld [vmem:[#allocation2 + $0x68] sm:$0xff]
    %v77 = vld [vmem:[#allocation2 + $0x70] sm:$0xff]
    %v78 = vld [vmem:[#allocation2 + $0x78] sm:$0xff]
    %v79 = vld [vmem:[#allocation2 + $0x80] sm:$0xff]
    %v80 = vld [vmem:[#allocation2 + $0x88] sm:$0xff]
    %v81 = vld [vmem:[#allocation2 + $0x90] sm:$0xff]
    %v82 = vld [vmem:[#allocation2 + $0x98] sm:$0xff]
    %v83 = vld [vmem:[#allocation2 + $0xa0] sm:$0xff]
    %v84 = vld [vmem:[#allocation2 + $0xa8] sm:$0xff]
    %v85 = vld [vmem:[#allocation2 + $0xb0] sm:$0xff]
    %v86 = vld [vmem:[#allocation2 + $0xb8] sm:$0xff]
    %v87 = vld [vmem:[#allocation2 + $0xc0] sm:$0xff]
    %v88 = vld [vmem:[#allocation2 + $0xc8] sm:$0xff]
    %v89 = vld [vmem:[#allocation2 + $0xd0] sm:$0xff]
    %v90 = vld [vmem:[#allocation2 + $0xd8] sm:$0xff]
    %v91 = vld [vmem:[#allocation2 + $0xe0] sm:$0xff]
    %v92 = vld [vmem:[#allocation2 + $0xe8] sm:$0xff]
    %v93 = vld [vmem:[#allocation2 + $0xf0] sm:$0xff]
    %v94 = vld [vmem:[#allocation2 + $0xf8] sm:$0xff]
    %v95 = vld [vmem:[#allocation2 + $0x100] sm:$0xff]
    %v96 = vld [vmem:[#allocation2 + $0x108] sm:$0xff]
    %v97 = vld [vmem:[#allocation2 + $0x110] sm:$0xff]
    %v98 = vld [vmem:[#allocation2 + $0x118] sm:$0xff]
    %v99 = vld [vmem:[#allocation2 + $0x120] sm:$0xff]
    %v100 = vld [vmem:[#allocation2 + $0x128] sm:$0xff]
    %v101 = vld [vmem:[#allocation2 + $0x130] sm:$0xff]
    %v102 = vld [vmem:[#allocation2 + $0x138] sm:$0xff]
    %v103 = vld [vmem:[#allocation2 + $0x140] sm:$0xff]
    %v104 = vld [vmem:[#allocation2 + $0x148] sm:$0xff]
    %v105 = vld [vmem:[#allocation2 + $0x150] sm:$0xff]
    %v106 = vld [vmem:[#allocation2 + $0x158] sm:$0xff]
    %v107 = vld [vmem:[#allocation2 + $0x160] sm:$0xff]
    %v108 = vld [vmem:[#allocation2 + $0x168] sm:$0xff]
    %v109 = vld [vmem:[#allocation2 + $0x170] sm:$0xff]
    %v110 = vld [vmem:[#allocation2 + $0x178] sm:$0xff]
    %v111 = vld [vmem:[#allocation2 + $0x180] sm:$0xff]
    %v112 = vld [vmem:[#allocation2 + $0x188] sm:$0xff]
    %v113 = vld [vmem:[#allocation2 + $0x190] sm:$0xff]
    %v114 = vld [vmem:[#allocation2 + $0x198] sm:$0xff]
    %v115 = vld [vmem:[#allocation2 + $0x1a0] sm:$0xff]
    %v116 = vld [vmem:[#allocation2 + $0x1a8] sm:$0xff]
    %v117 = vld [vmem:[#allocation2 + $0x1b0] sm:$0xff]
    %v118 = vld [vmem:[#allocation2 + $0x1b8] sm:$0xff]
    %v119 = vld [vmem:[#allocation2 + $0x1c0] sm:$0xff]
    %v120 = vld [vmem:[#allocation2 + $0x1c8] sm:$0xff]
    %v121 = vld [vmem:[#allocation2 + $0x1d0] sm:$0xff]
    %v122 = vld [vmem:[#allocation2 + $0x1d8] sm:$0xff]
    %v123 = vld [vmem:[#allocation2 + $0x1e0] sm:$0xff]
    %v124 = vld [vmem:[#allocation2 + $0x1e8] sm:$0xff]
    %v125 = vld [vmem:[#allocation2 + $0x1f0] sm:$0xff]
    %v126 = vld [vmem:[#allocation2 + $0x1f8] sm:$0xff]
    %v127 = vld [vmem:[#allocation2 + $0x200] sm:$0xff]
    %v128 = vld [vmem:[#allocation2 + $0x208] sm:$0xff]
    %v129 = vld [vmem:[#allocation2 + $0x210] sm:$0xff]
    %v130 = vld [vmem:[#allocation2 + $0x218] sm:$0xff]
    %v131 = vld [vmem:[#allocation2 + $0x220] sm:$0xff]
    %v132 = vld [vmem:[#allocation2 + $0x228] sm:$0xff]
    %v133 = vld [vmem:[#allocation2 + $0x230] sm:$0xff]
    %v134 = vld [vmem:[#allocation2 + $0x238] sm:$0xff]
    %v135 = vld [vmem:[#allocation2 + $0x240] sm:$0xff]
    %v136 = vld [vmem:[#allocation2 + $0x248] sm:$0xff]
    %v137 = vld [vmem:[#allocation2 + $0x250] sm:$0xff]
    %v138 = vld [vmem:[#allocation2 + $0x258] sm:$0xff]
    %v139 = vld [vmem:[#allocation2 + $0x260] sm:$0xff]
    %v140 = vld [vmem:[#allocation2 + $0x268] sm:$0xff]
    %v141 = vld [vmem:[#allocation2 + $0x270] sm:$0xff]
    %v142 = vld [vmem:[#allocation2 + $0x278] sm:$0xff]
    %v143 = vld [vmem:[#allocation2 + $0x280] sm:$0xff]
    %v144 = vld [vmem:[#allocation2 + $0x288] sm:$0xff]
    %v145 = vld [vmem:[#allocation2 + $0x290] sm:$0xff]
    %v146 = vld [vmem:[#allocation2 + $0x298] sm:$0xff]
    %v147 = vld [vmem:[#allocation2 + $0x2a0] sm:$0xff]
    %v148 = vld [vmem:[#allocation2 + $0x2a8] sm:$0xff]
    %v149 = vld [vmem:[#allocation2 + $0x2b0] sm:$0xff]
    %v150 = vld [vmem:[#allocation2 + $0x2b8] sm:$0xff]
    %v151 = vld [vmem:[#allocation2 + $0x2c0] sm:$0xff]
    %v152 = vld [vmem:[#allocation2 + $0x2c8] sm:$0xff]
    %v153 = vld [vmem:[#allocation2 + $0x2d0] sm:$0xff]
    %v154 = vld [vmem:[#allocation2 + $0x2d8] sm:$0xff]
    %v155 = vld [vmem:[#allocation2 + $0x2e0] sm:$0xff]
    %v156 = vld [vmem:[#allocation2 + $0x2e8] sm:$0xff]
    %v157 = vld [vmem:[#allocation2 + $0x2f0] sm:$0xff]
    %v158 = vld [vmem:[#allocation2 + $0x2f8] sm:$0xff]
    %v159 = vld [vmem:[#allocation2 + $0x300] sm:$0xff]
    %v160 = vld [vmem:[#allocation2 + $0x308] sm:$0xff]
    %v161 = vld [vmem:[#allocation2 + $0x310] sm:$0xff]
    %v162 = vld [vmem:[#allocation2 + $0x318] sm:$0xff]
    %v163 = vld [vmem:[#allocation2 + $0x320] sm:$0xff]
    %v164 = vld [vmem:[#allocation2 + $0x328] sm:$0xff]
    %v165 = vld [vmem:[#allocation2 + $0x330] sm:$0xff]
    %v166 = vld [vmem:[#allocation2 + $0x338] sm:$0xff]
    %v167 = vld [vmem:[#allocation2 + $0x340] sm:$0xff]
    %v168 = vld [vmem:[#allocation2 + $0x348] sm:$0xff]
    %v169 = vld [vmem:[#allocation2 + $0x350] sm:$0xff]
    %v170 = vld [vmem:[#allocation2 + $0x358] sm:$0xff]
    %v171 = vld [vmem:[#allocation2 + $0x360] sm:$0xff]
    %v172 = vld [vmem:[#allocation2 + $0x368] sm:$0xff]
    %v173 = vld [vmem:[#allocation2 + $0x370] sm:$0xff]
    %v174 = vld [vmem:[#allocation2 + $0x378] sm:$0xff]
    %v175 = vld [vmem:[#allocation2 + $0x380] sm:$0xff]
    %v176 = vld [vmem:[#allocation2 + $0x388] sm:$0xff]
    %v177 = vld [vmem:[#allocation2 + $0x390] sm:$0xff]
    %v178 = vld [vmem:[#allocation2 + $0x398] sm:$0xff]
    %v179 = vld [vmem:[#allocation2 + $0x3a0] sm:$0xff]
    %v180 = vld [vmem:[#allocation2 + $0x3a8] sm:$0xff]
    %v181 = vld [vmem:[#allocation2 + $0x3b0] sm:$0xff]
    %v182 = vld [vmem:[#allocation2 + $0x3b8] sm:$0xff]
    %v183 = vld [vmem:[#allocation2 + $0x3c0] sm:$0xff]
    %v184 = vld [vmem:[#allocation2 + $0x3c8] sm:$0xff]
    %v185 = vld [vmem:[#allocation2 + $0x3d0] sm:$0xff]
    %v186 = vld [vmem:[#allocation2 + $0x3d8] sm:$0xff]
    %v187 = vld [vmem:[#allocation2 + $0x3e0] sm:$0xff]
    %v188 = vld [vmem:[#allocation2 + $0x3e8] sm:$0xff]
    %v189 = vld [vmem:[#allocation2 + $0x3f0] sm:$0xff]
    %v190 = vld [vmem:[#allocation2 + $0x3f8] sm:$0xff]
    %v191 = vpack.c.bf16 %v67, %v63
    %v192 = vpack.c.bf16 %v68, %v64
    %v193 = vpack.c.bf16 %v69, %v65
    %v194 = vpack.c.bf16 %v70, %v66
    %v195 = vpack.c.bf16 %v75, %v71
    %v196 = vpack.c.bf16 %v76, %v72
    %v197 = vpack.c.bf16 %v77, %v73
    %v198 = vpack.c.bf16 %v78, %v74
    %v199 = vpack.c.bf16 %v83, %v79
    %v200 = vpack.c.bf16 %v84, %v80
    %v201 = vpack.c.bf16 %v85, %v81
    %v202 = vpack.c.bf16 %v86, %v82
    %v203 = vpack.c.bf16 %v91, %v87
    %v204 = vpack.c.bf16 %v92, %v88
    %v205 = vpack.c.bf16 %v93, %v89
    %v206 = vpack.c.bf16 %v94, %v90
    %v207 = vpack.c.bf16 %v99, %v95
    %v208 = vpack.c.bf16 %v100, %v96
    %v209 = vpack.c.bf16 %v101, %v97
    %v210 = vpack.c.bf16 %v102, %v98
    %v211 = vpack.c.bf16 %v107, %v103
    %v212 = vpack.c.bf16 %v108, %v104
    %v213 = vpack.c.bf16 %v109, %v105
    %v214 = vpack.c.bf16 %v110, %v106
    %v215 = vpack.c.bf16 %v115, %v111
    %v216 = vpack.c.bf16 %v116, %v112
    %v217 = vpack.c.bf16 %v117, %v113
    %v218 = vpack.c.bf16 %v118, %v114
    %v219 = vpack.c.bf16 %v123, %v119
    %v220 = vpack.c.bf16 %v124, %v120
    %v221 = vpack.c.bf16 %v125, %v121
    %v222 = vpack.c.bf16 %v126, %v122
    %v223 = vpack.c.bf16 %v131, %v127
    %v224 = vpack.c.bf16 %v132, %v128
    %v225 = vpack.c.bf16 %v133, %v129
    %v226 = vpack.c.bf16 %v134, %v130
    %v227 = vpack.c.bf16 %v139, %v135
    %v228 = vpack.c.bf16 %v140, %v136
    %v229 = vpack.c.bf16 %v141, %v137
    %v230 = vpack.c.bf16 %v142, %v138
    %v231 = vpack.c.bf16 %v147, %v143
    %v232 = vpack.c.bf16 %v148, %v144
    %v233 = vpack.c.bf16 %v149, %v145
    %v234 = vpack.c.bf16 %v150, %v146
    %v235 = vpack.c.bf16 %v155, %v151
    %v236 = vpack.c.bf16 %v156, %v152
    %v237 = vpack.c.bf16 %v157, %v153
    %v238 = vpack.c.bf16 %v158, %v154
    %v239 = vpack.c.bf16 %v163, %v159
    %v240 = vpack.c.bf16 %v164, %v160
    %v241 = vpack.c.bf16 %v165, %v161
    %v242 = vpack.c.bf16 %v166, %v162
    %v243 = vpack.c.bf16 %v171, %v167
    %v244 = vpack.c.bf16 %v172, %v168
    %v245 = vpack.c.bf16 %v173, %v169
    %v246 = vpack.c.bf16 %v174, %v170
    %v247 = vpack.c.bf16 %v179, %v175
    %v248 = vpack.c.bf16 %v180, %v176
    %v249 = vpack.c.bf16 %v181, %v177
    %v250 = vpack.c.bf16 %v182, %v178
    %v251 = vpack.c.bf16 %v187, %v183
    %v252 = vpack.c.bf16 %v188, %v184
    %v253 = vpack.c.bf16 %v189, %v185
    %v254 = vpack.c.bf16 %v190, %v186
    %v255 = vld [vmem:[#allocation5] sm:$0xf]
    %v256 = vld [vmem:[#allocation5 + $0x4] sm:$0xf]
    %v257 = vld [vmem:[#allocation5 + $0x8] sm:$0xf]
    %v258 = vld [vmem:[#allocation5 + $0xc] sm:$0xf]
    %v259 = vld [vmem:[#allocation5 + $0x10] sm:$0xf]
    %v260 = vld [vmem:[#allocation5 + $0x14] sm:$0xf]
    %v261 = vld [vmem:[#allocation5 + $0x18] sm:$0xf]
    %v262 = vld [vmem:[#allocation5 + $0x1c] sm:$0xf]
    %v263 = vld [vmem:[#allocation5 + $0x20] sm:$0xf]
    %v264 = vld [vmem:[#allocation5 + $0x24] sm:$0xf]
    %v265 = vld [vmem:[#allocation5 + $0x28] sm:$0xf]
    %v266 = vld [vmem:[#allocation5 + $0x2c] sm:$0xf]
    %v267 = vld [vmem:[#allocation5 + $0x30] sm:$0xf]
    %v268 = vld [vmem:[#allocation5 + $0x34] sm:$0xf]
    %v269 = vld [vmem:[#allocation5 + $0x38] sm:$0xf]
    %v270 = vld [vmem:[#allocation5 + $0x3c] sm:$0xf]
    %v271 = vld [vmem:[#allocation5 + $0x40] sm:$0xf]
    %v272 = vld [vmem:[#allocation5 + $0x44] sm:$0xf]
    %v273 = vld [vmem:[#allocation5 + $0x48] sm:$0xf]
    %v274 = vld [vmem:[#allocation5 + $0x4c] sm:$0xf]
    %v275 = vld [vmem:[#allocation5 + $0x50] sm:$0xf]
    %v276 = vld [vmem:[#allocation5 + $0x54] sm:$0xf]
    %v277 = vld [vmem:[#allocation5 + $0x58] sm:$0xf]
    %v278 = vld [vmem:[#allocation5 + $0x5c] sm:$0xf]
    %v279 = vld [vmem:[#allocation5 + $0x60] sm:$0xf]
    %v280 = vld [vmem:[#allocation5 + $0x64] sm:$0xf]
    %v281 = vld [vmem:[#allocation5 + $0x68] sm:$0xf]
    %v282 = vld [vmem:[#allocation5 + $0x6c] sm:$0xf]
    %v283 = vld [vmem:[#allocation5 + $0x70] sm:$0xf]
    %v284 = vld [vmem:[#allocation5 + $0x74] sm:$0xf]
    %v285 = vld [vmem:[#allocation5 + $0x78] sm:$0xf]
    %v286 = vld [vmem:[#allocation5 + $0x7c] sm:$0xf]
    %v287 = vld [vmem:[#allocation5 + $0x80] sm:$0xf]
    %v288 = vld [vmem:[#allocation5 + $0x84] sm:$0xf]
    %v289 = vld [vmem:[#allocation5 + $0x88] sm:$0xf]
    %v290 = vld [vmem:[#allocation5 + $0x8c] sm:$0xf]
    %v291 = vld [vmem:[#allocation5 + $0x90] sm:$0xf]
    %v292 = vld [vmem:[#allocation5 + $0x94] sm:$0xf]
    %v293 = vld [vmem:[#allocation5 + $0x98] sm:$0xf]
    %v294 = vld [vmem:[#allocation5 + $0x9c] sm:$0xf]
    %v295 = vld [vmem:[#allocation5 + $0xa0] sm:$0xf]
    %v296 = vld [vmem:[#allocation5 + $0xa4] sm:$0xf]
    %v297 = vld [vmem:[#allocation5 + $0xa8] sm:$0xf]
    %v298 = vld [vmem:[#allocation5 + $0xac] sm:$0xf]
    %v299 = vld [vmem:[#allocation5 + $0xb0] sm:$0xf]
    %v300 = vld [vmem:[#allocation5 + $0xb4] sm:$0xf]
    %v301 = vld [vmem:[#allocation5 + $0xb8] sm:$0xf]
    %v302 = vld [vmem:[#allocation5 + $0xbc] sm:$0xf]
    %v303 = vld [vmem:[#allocation5 + $0xc0] sm:$0xf]
    %v304 = vld [vmem:[#allocation5 + $0xc4] sm:$0xf]
    %v305 = vld [vmem:[#allocation5 + $0xc8] sm:$0xf]
    %v306 = vld [vmem:[#allocation5 + $0xcc] sm:$0xf]
    %v307 = vld [vmem:[#allocation5 + $0xd0] sm:$0xf]
    %v308 = vld [vmem:[#allocation5 + $0xd4] sm:$0xf]
    %v309 = vld [vmem:[#allocation5 + $0xd8] sm:$0xf]
    %v310 = vld [vmem:[#allocation5 + $0xdc] sm:$0xf]
    %v311 = vld [vmem:[#allocation5 + $0xe0] sm:$0xf]
    %v312 = vld [vmem:[#allocation5 + $0xe4] sm:$0xf]
    %v313 = vld [vmem:[#allocation5 + $0xe8] sm:$0xf]
    %v314 = vld [vmem:[#allocation5 + $0xec] sm:$0xf]
    %v315 = vld [vmem:[#allocation5 + $0xf0] sm:$0xf]
    %v316 = vld [vmem:[#allocation5 + $0xf4] sm:$0xf]
    %v317 = vld [vmem:[#allocation5 + $0xf8] sm:$0xf]
    %v318 = vld [vmem:[#allocation5 + $0xfc] sm:$0xf]
    %v319 = vld [vmem:[%s2] sm:$0x1]
    %v320 = vld [vmem:[#allocation7] sm:$0xf]
    %v321 = vld [vmem:[#allocation7 + $0x4] sm:$0xf]
    %v322 = vld [vmem:[#allocation7 + $0x8] sm:$0xf]
    %v323 = vld [vmem:[#allocation7 + $0xc] sm:$0xf]
    %v324 = vld [vmem:[#allocation7 + $0x10] sm:$0xf]
    %v325 = vld [vmem:[#allocation7 + $0x14] sm:$0xf]
    %v326 = vld [vmem:[#allocation7 + $0x18] sm:$0xf]
    %v327 = vld [vmem:[#allocation7 + $0x1c] sm:$0xf]
    %v328 = vld [vmem:[#allocation7 + $0x20] sm:$0xf]
    %v329 = vld [vmem:[#allocation7 + $0x24] sm:$0xf]
    %v330 = vld [vmem:[#allocation7 + $0x28] sm:$0xf]
    %v331 = vld [vmem:[#allocation7 + $0x2c] sm:$0xf]
    %v332 = vld [vmem:[#allocation7 + $0x30] sm:$0xf]
    %v333 = vld [vmem:[#allocation7 + $0x34] sm:$0xf]
    %v334 = vld [vmem:[#allocation7 + $0x38] sm:$0xf]
    %v335 = vld [vmem:[#allocation7 + $0x3c] sm:$0xf]
    %v336 = vld [vmem:[%s4] sm:$0x1]
    %v338 = vlaneseq
    %v339 = vshrl.u32 %v338, 7
    %v340 = vsub.s32 0, %v339
    %v341 = vrot.slane %v319, %v340
    %v407 = vunpack.c.l.b16 %v255
    %v408 = vunpack.c.l.b16 %v256
    %v409 = vunpack.c.l.b16 %v257
    %v410 = vunpack.c.l.b16 %v258
    %v411 = vunpack.c.l.b16 %v259
    %v412 = vunpack.c.l.b16 %v260
    %v413 = vunpack.c.l.b16 %v261
    %v414 = vunpack.c.l.b16 %v262
    %v415 = vunpack.c.l.b16 %v263
    %v416 = vunpack.c.l.b16 %v264
    %v417 = vunpack.c.l.b16 %v265
    %v418 = vunpack.c.l.b16 %v266
    %v419 = vunpack.c.l.b16 %v267
    %v420 = vunpack.c.l.b16 %v268
    %v421 = vunpack.c.l.b16 %v269
    %v422 = vunpack.c.l.b16 %v270
    %v423 = vunpack.c.l.b16 %v271
    %v424 = vunpack.c.l.b16 %v272
    %v425 = vunpack.c.l.b16 %v273
    %v426 = vunpack.c.l.b16 %v274
    %v427 = vunpack.c.l.b16 %v275
    %v428 = vunpack.c.l.b16 %v276
    %v429 = vunpack.c.l.b16 %v277
    %v430 = vunpack.c.l.b16 %v278
    %v431 = vunpack.c.l.b16 %v279
    %v432 = vunpack.c.l.b16 %v280
    %v433 = vunpack.c.l.b16 %v281
    %v434 = vunpack.c.l.b16 %v282
    %v435 = vunpack.c.l.b16 %v283
    %v436 = vunpack.c.l.b16 %v284
    %v437 = vunpack.c.l.b16 %v285
    %v438 = vunpack.c.l.b16 %v286
    %v439 = vunpack.c.l.b16 %v287
    %v440 = vunpack.c.l.b16 %v288
    %v441 = vunpack.c.l.b16 %v289
    %v442 = vunpack.c.l.b16 %v290
    %v443 = vunpack.c.l.b16 %v291
    %v444 = vunpack.c.l.b16 %v292
    %v445 = vunpack.c.l.b16 %v293
    %v446 = vunpack.c.l.b16 %v294
    %v447 = vunpack.c.l.b16 %v295
    %v448 = vunpack.c.l.b16 %v296
    %v449 = vunpack.c.l.b16 %v297
    %v450 = vunpack.c.l.b16 %v298
    %v451 = vunpack.c.l.b16 %v299
    %v452 = vunpack.c.l.b16 %v300
    %v453 = vunpack.c.l.b16 %v301
    %v454 = vunpack.c.l.b16 %v302
    %v455 = vunpack.c.l.b16 %v303
    %v456 = vunpack.c.l.b16 %v304
    %v457 = vunpack.c.l.b16 %v305
    %v458 = vunpack.c.l.b16 %v306
    %v459 = vunpack.c.l.b16 %v307
    %v460 = vunpack.c.l.b16 %v308
    %v461 = vunpack.c.l.b16 %v309
    %v462 = vunpack.c.l.b16 %v310
    %v463 = vunpack.c.l.b16 %v311
    %v464 = vunpack.c.l.b16 %v312
    %v465 = vunpack.c.l.b16 %v313
    %v466 = vunpack.c.l.b16 %v314
    %v467 = vunpack.c.l.b16 %v315
    %v468 = vunpack.c.l.b16 %v316
    %v469 = vunpack.c.l.b16 %v317
    %v470 = vunpack.c.l.b16 %v318
    %v471 = vpack.c.b16 %v408, %v407
    %v472 = vpack.c.b16 %v410, %v409
    %v473 = vpack.c.b16 %v412, %v411
    %v474 = vpack.c.b16 %v414, %v413
    %v475 = vpack.c.b16 %v416, %v415
    %v476 = vpack.c.b16 %v418, %v417
    %v477 = vpack.c.b16 %v420, %v419
    %v478 = vpack.c.b16 %v422, %v421
    %v479 = vpack.c.b16 %v424, %v423
    %v480 = vpack.c.b16 %v426, %v425
    %v481 = vpack.c.b16 %v428, %v427
    %v482 = vpack.c.b16 %v430, %v429
    %v483 = vpack.c.b16 %v432, %v431
    %v484 = vpack.c.b16 %v434, %v433
    %v485 = vpack.c.b16 %v436, %v435
    %v486 = vpack.c.b16 %v438, %v437
    %v487 = vpack.c.b16 %v440, %v439
    %v488 = vpack.c.b16 %v442, %v441
    %v489 = vpack.c.b16 %v444, %v443
    %v490 = vpack.c.b16 %v446, %v445
    %v491 = vpack.c.b16 %v448, %v447
    %v492 = vpack.c.b16 %v450, %v449
    %v493 = vpack.c.b16 %v452, %v451
    %v494 = vpack.c.b16 %v454, %v453
    %v495 = vpack.c.b16 %v456, %v455
    %v496 = vpack.c.b16 %v458, %v457
    %v497 = vpack.c.b16 %v460, %v459
    %v498 = vpack.c.b16 %v462, %v461
    %v499 = vpack.c.b16 %v464, %v463
    %v500 = vpack.c.b16 %v466, %v465
    %v501 = vpack.c.b16 %v468, %v467
    %v502 = vpack.c.b16 %v470, %v469
    %535 = vmatprep.subr.bf16.mxu0 0
    %536 = vmatpush1.bf16.msra.mxu0 %v478
    %537 = vmatprep.subr.bf16.mxu0 0
    %538 = vmatpush1.bf16.msra.mxu0 %v477
    %539 = vmatprep.subr.bf16.mxu0 0
    %540 = vmatpush1.bf16.msra.mxu0 %v476
    %541 = vmatprep.subr.bf16.mxu0 0
    %542 = vmatpush1.bf16.msra.mxu0 %v475
    %543 = vmatprep.subr.bf16.mxu0 0
    %544 = vmatpush1.bf16.msra.mxu0 %v474
    %545 = vmatprep.subr.bf16.mxu0 0
    %546 = vmatpush1.bf16.msra.mxu0 %v473
    %547 = vmatprep.subr.bf16.mxu0 0
    %548 = vmatpush1.bf16.msra.mxu0 %v472
    %549 = vmatprep.subr.bf16.mxu0 0
    %550 = vmatpush1.bf16.msra.mxu0 %v471
    %551 = vmatprep.subr.bf16.mxu0 0
    %552 = vmatpush2.bf16.msra.mxu0 %v486
    %553 = vmatprep.subr.bf16.mxu0 0
    %554 = vmatpush2.bf16.msra.mxu0 %v485
    %555 = vmatprep.subr.bf16.mxu0 0
    %556 = vmatpush2.bf16.msra.mxu0 %v484
    %557 = vmatprep.subr.bf16.mxu0 0
    %558 = vmatpush2.bf16.msra.mxu0 %v483
    %559 = vmatprep.subr.bf16.mxu0 0
    %560 = vmatpush2.bf16.msra.mxu0 %v482
    %561 = vmatprep.subr.bf16.mxu0 0
    %562 = vmatpush2.bf16.msra.mxu0 %v481
    %563 = vmatprep.subr.bf16.mxu0 0
    %564 = vmatpush2.bf16.msra.mxu0 %v480
    %565 = vmatprep.subr.bf16.mxu0 0
    %566 = vmatpush2.bf16.msra.mxu0 %v479
    %567 = vmatprep.mubr.bf16.mxu0 %v192
    %568 = vmatmul.mubr.bf16.gmra.mxu0 %v191
    %v569 = vpop.f32.mrf.mxu0
    %v570 = vadd.f32 %v341, %v569
    %v571 = vpop.f32.mrf.mxu0
    %v572 = vpop.f32.mrf.mxu0
    %v573 = vadd.f32 %v341, %v572
    %v574 = vpop.f32.mrf.mxu0
    %575 = vmatprep.mubr.bf16.mxu0 %v196
    %576 = vmatmul.mubr.bf16.gmra.mxu0 %v195
    %v577 = vpop.f32.mrf.mxu0
    %v578 = vadd.f32 %v341, %v577
    %v579 = vpop.f32.mrf.mxu0
    %v580 = vpop.f32.mrf.mxu0
    %v581 = vadd.f32 %v341, %v580
    %v582 = vpop.f32.mrf.mxu0
    %583 = vmatprep.mubr.bf16.mxu0 %v200
    %584 = vmatmul.mubr.bf16.gmra.mxu0 %v199
    %v585 = vpop.f32.mrf.mxu0
    %v586 = vadd.f32 %v341, %v585
    %v587 = vpop.f32.mrf.mxu0
    %v588 = vpop.f32.mrf.mxu0
    %v589 = vadd.f32 %v341, %v588
    %v590 = vpop.f32.mrf.mxu0
    %591 = vmatprep.mubr.bf16.mxu0 %v204
    %592 = vmatmul.mubr.bf16.gmra.mxu0 %v203
    %v593 = vpop.f32.mrf.mxu0
    %v594 = vadd.f32 %v341, %v593
    %v595 = vpop.f32.mrf.mxu0
    %v596 = vpop.f32.mrf.mxu0
    %v597 = vadd.f32 %v341, %v596
    %v598 = vpop.f32.mrf.mxu0
    %599 = vmatprep.mubr.bf16.mxu0 %v208
    %600 = vmatmul.mubr.bf16.gmra.mxu0 %v207
    %v601 = vpop.f32.mrf.mxu0
    %v602 = vadd.f32 %v341, %v601
    %v603 = vpop.f32.mrf.mxu0
    %v604 = vpop.f32.mrf.mxu0
    %v605 = vadd.f32 %v341, %v604
    %v606 = vpop.f32.mrf.mxu0
    %607 = vmatprep.mubr.bf16.mxu0 %v212
    %608 = vmatmul.mubr.bf16.gmra.mxu0 %v211
    %v609 = vpop.f32.mrf.mxu0
    %v610 = vadd.f32 %v341, %v609
    %v611 = vpop.f32.mrf.mxu0
    %v612 = vpop.f32.mrf.mxu0
    %v613 = vadd.f32 %v341, %v612
    %v614 = vpop.f32.mrf.mxu0
    %615 = vmatprep.mubr.bf16.mxu0 %v216
    %616 = vmatmul.mubr.bf16.gmra.mxu0 %v215
    %v617 = vpop.f32.mrf.mxu0
    %v618 = vadd.f32 %v341, %v617
    %v619 = vpop.f32.mrf.mxu0
    %v620 = vpop.f32.mrf.mxu0
    %v621 = vadd.f32 %v341, %v620
    %v622 = vpop.f32.mrf.mxu0
    %623 = vmatprep.mubr.bf16.mxu0 %v220
    %624 = vmatmul.mubr.bf16.gmra.mxu0 %v219
    %v625 = vpop.f32.mrf.mxu0
    %v626 = vadd.f32 %v341, %v625
    %v627 = vpop.f32.mrf.mxu0
    %v628 = vpop.f32.mrf.mxu0
    %v629 = vadd.f32 %v341, %v628
    %v630 = vpop.f32.mrf.mxu0
    %631 = vmatprep.mubr.bf16.mxu0 %v224
    %632 = vmatmul.mubr.bf16.gmra.mxu0 %v223
    %v633 = vpop.f32.mrf.mxu0
    %v634 = vadd.f32 %v341, %v633
    %v635 = vpop.f32.mrf.mxu0
    %v636 = vpop.f32.mrf.mxu0
    %v637 = vadd.f32 %v341, %v636
    %v638 = vpop.f32.mrf.mxu0
    %639 = vmatprep.mubr.bf16.mxu0 %v228
    %640 = vmatmul.mubr.bf16.gmra.mxu0 %v227
    %v641 = vpop.f32.mrf.mxu0
    %v642 = vadd.f32 %v341, %v641
    %v643 = vpop.f32.mrf.mxu0
    %v644 = vpop.f32.mrf.mxu0
    %v645 = vadd.f32 %v341, %v644
    %v646 = vpop.f32.mrf.mxu0
    %647 = vmatprep.mubr.bf16.mxu0 %v232
    %648 = vmatmul.mubr.bf16.gmra.mxu0 %v231
    %v649 = vpop.f32.mrf.mxu0
    %v650 = vadd.f32 %v341, %v649
    %v651 = vpop.f32.mrf.mxu0
    %v652 = vpop.f32.mrf.mxu0
    %v653 = vadd.f32 %v341, %v652
    %v654 = vpop.f32.mrf.mxu0
    %655 = vmatprep.mubr.bf16.mxu0 %v236
    %656 = vmatmul.mubr.bf16.gmra.mxu0 %v235
    %v657 = vpop.f32.mrf.mxu0
    %v658 = vadd.f32 %v341, %v657
    %v659 = vpop.f32.mrf.mxu0
    %v660 = vpop.f32.mrf.mxu0
    %v661 = vadd.f32 %v341, %v660
    %v662 = vpop.f32.mrf.mxu0
    %663 = vmatprep.mubr.bf16.mxu0 %v240
    %664 = vmatmul.mubr.bf16.gmra.mxu0 %v239
    %v665 = vpop.f32.mrf.mxu0
    %v666 = vadd.f32 %v341, %v665
    %v667 = vpop.f32.mrf.mxu0
    %v668 = vpop.f32.mrf.mxu0
    %v669 = vadd.f32 %v341, %v668
    %v670 = vpop.f32.mrf.mxu0
    %671 = vmatprep.mubr.bf16.mxu0 %v244
    %672 = vmatmul.mubr.bf16.gmra.mxu0 %v243
    %v673 = vpop.f32.mrf.mxu0
    %v674 = vadd.f32 %v341, %v673
    %v675 = vpop.f32.mrf.mxu0
    %v676 = vpop.f32.mrf.mxu0
    %v677 = vadd.f32 %v341, %v676
    %v678 = vpop.f32.mrf.mxu0
    %679 = vmatprep.mubr.bf16.mxu0 %v248
    %680 = vmatmul.mubr.bf16.gmra.mxu0 %v247
    %v681 = vpop.f32.mrf.mxu0
    %v682 = vadd.f32 %v341, %v681
    %v683 = vpop.f32.mrf.mxu0
    %v684 = vpop.f32.mrf.mxu0
    %v685 = vadd.f32 %v341, %v684
    %v686 = vpop.f32.mrf.mxu0
    %687 = vmatprep.mubr.bf16.mxu0 %v252
    %688 = vmatmul.mubr.bf16.gmra.mxu0 %v251
    %v689 = vpop.f32.mrf.mxu0
    %v690 = vadd.f32 %v341, %v689
    %v691 = vpop.f32.mrf.mxu0
    %v692 = vpop.f32.mrf.mxu0
    %v693 = vadd.f32 %v341, %v692
    %v694 = vpop.f32.mrf.mxu0
    %695 = vdwg.mxu0
    %696 = vmatprep.subr.bf16.mxu0 0
    %697 = vmatpush1.bf16.msra.mxu0 %v494
    %698 = vmatprep.subr.bf16.mxu0 0
    %699 = vmatpush1.bf16.msra.mxu0 %v493
    %700 = vmatprep.subr.bf16.mxu0 0
    %701 = vmatpush1.bf16.msra.mxu0 %v492
    %702 = vmatprep.subr.bf16.mxu0 0
    %703 = vmatpush1.bf16.msra.mxu0 %v491
    %704 = vmatprep.subr.bf16.mxu0 0
    %705 = vmatpush1.bf16.msra.mxu0 %v490
    %706 = vmatprep.subr.bf16.mxu0 0
    %707 = vmatpush1.bf16.msra.mxu0 %v489
    %708 = vmatprep.subr.bf16.mxu0 0
    %709 = vmatpush1.bf16.msra.mxu0 %v488
    %710 = vmatprep.subr.bf16.mxu0 0
    %711 = vmatpush1.bf16.msra.mxu0 %v487
    %712 = vmatprep.subr.bf16.mxu0 0
    %713 = vmatpush2.bf16.msra.mxu0 %v502
    %714 = vmatprep.subr.bf16.mxu0 0
    %715 = vmatpush2.bf16.msra.mxu0 %v501
    %716 = vmatprep.subr.bf16.mxu0 0
    %717 = vmatpush2.bf16.msra.mxu0 %v500
    %718 = vmatprep.subr.bf16.mxu0 0
    %719 = vmatpush2.bf16.msra.mxu0 %v499
    %720 = vmatprep.subr.bf16.mxu0 0
    %721 = vmatpush2.bf16.msra.mxu0 %v498
    %722 = vmatprep.subr.bf16.mxu0 0
    %723 = vmatpush2.bf16.msra.mxu0 %v497
    %724 = vmatprep.subr.bf16.mxu0 0
    %725 = vmatpush2.bf16.msra.mxu0 %v496
    %726 = vmatprep.subr.bf16.mxu0 0
    %727 = vmatpush2.bf16.msra.mxu0 %v495
    %728 = vmatprep.mubr.bf16.mxu0 %v194
    %729 = vmatmul.mubr.bf16.gmra.mxu0 %v193
    %v730 = vpop.f32.mrf.mxu0
    %v731 = vadd.f32 %v570, %v730
    %v732 = vpop.f32.mrf.mxu0
    %v733 = vpop.f32.mrf.mxu0
    %v734 = vadd.f32 %v573, %v733
    %v735 = vpop.f32.mrf.mxu0
    %736 = vmatprep.mubr.bf16.mxu0 %v198
    %737 = vmatmul.mubr.bf16.gmra.mxu0 %v197
    %v738 = vpop.f32.mrf.mxu0
    %v739 = vadd.f32 %v578, %v738
    %v740 = vpop.f32.mrf.mxu0
    %v741 = vpop.f32.mrf.mxu0
    %v742 = vadd.f32 %v581, %v741
    %v743 = vpop.f32.mrf.mxu0
    %744 = vmatprep.mubr.bf16.mxu0 %v202
    %745 = vmatmul.mubr.bf16.gmra.mxu0 %v201
    %v746 = vpop.f32.mrf.mxu0
    %v747 = vadd.f32 %v586, %v746
    %v748 = vpop.f32.mrf.mxu0
    %v749 = vpop.f32.mrf.mxu0
    %v750 = vadd.f32 %v589, %v749
    %v751 = vpop.f32.mrf.mxu0
    %752 = vmatprep.mubr.bf16.mxu0 %v206
    %753 = vmatmul.mubr.bf16.gmra.mxu0 %v205
    %v754 = vpop.f32.mrf.mxu0
    %v755 = vadd.f32 %v594, %v754
    %v756 = vpop.f32.mrf.mxu0
    %v757 = vpop.f32.mrf.mxu0
    %v758 = vadd.f32 %v597, %v757
    %v759 = vpop.f32.mrf.mxu0
    %760 = vmatprep.mubr.bf16.mxu0 %v210
    %761 = vmatmul.mubr.bf16.gmra.mxu0 %v209
    %v762 = vpop.f32.mrf.mxu0
    %v763 = vadd.f32 %v602, %v762
    %v764 = vpop.f32.mrf.mxu0
    %v765 = vpop.f32.mrf.mxu0
    %v766 = vadd.f32 %v605, %v765
    %v767 = vpop.f32.mrf.mxu0
    %768 = vmatprep.mubr.bf16.mxu0 %v214
    %769 = vmatmul.mubr.bf16.gmra.mxu0 %v213
    %v770 = vpop.f32.mrf.mxu0
    %v771 = vadd.f32 %v610, %v770
    %v772 = vpop.f32.mrf.mxu0
    %v773 = vpop.f32.mrf.mxu0
    %v774 = vadd.f32 %v613, %v773
    %v775 = vpop.f32.mrf.mxu0
    %776 = vmatprep.mubr.bf16.mxu0 %v218
    %777 = vmatmul.mubr.bf16.gmra.mxu0 %v217
    %v778 = vpop.f32.mrf.mxu0
    %v779 = vadd.f32 %v618, %v778
    %v780 = vpop.f32.mrf.mxu0
    %v781 = vpop.f32.mrf.mxu0
    %v782 = vadd.f32 %v621, %v781
    %v783 = vpop.f32.mrf.mxu0
    %784 = vmatprep.mubr.bf16.mxu0 %v222
    %785 = vmatmul.mubr.bf16.gmra.mxu0 %v221
    %v786 = vpop.f32.mrf.mxu0
    %v787 = vadd.f32 %v626, %v786
    %v788 = vpop.f32.mrf.mxu0
    %v789 = vpop.f32.mrf.mxu0
    %v790 = vadd.f32 %v629, %v789
    %v791 = vpop.f32.mrf.mxu0
    %792 = vmatprep.mubr.bf16.mxu0 %v226
    %793 = vmatmul.mubr.bf16.gmra.mxu0 %v225
    %v794 = vpop.f32.mrf.mxu0
    %v795 = vadd.f32 %v634, %v794
    %v796 = vpop.f32.mrf.mxu0
    %v797 = vpop.f32.mrf.mxu0
    %v798 = vadd.f32 %v637, %v797
    %v799 = vpop.f32.mrf.mxu0
    %800 = vmatprep.mubr.bf16.mxu0 %v230
    %801 = vmatmul.mubr.bf16.gmra.mxu0 %v229
    %v802 = vpop.f32.mrf.mxu0
    %v803 = vadd.f32 %v642, %v802
    %v804 = vpop.f32.mrf.mxu0
    %v805 = vpop.f32.mrf.mxu0
    %v806 = vadd.f32 %v645, %v805
    %v807 = vpop.f32.mrf.mxu0
    %808 = vmatprep.mubr.bf16.mxu0 %v234
    %809 = vmatmul.mubr.bf16.gmra.mxu0 %v233
    %v810 = vpop.f32.mrf.mxu0
    %v811 = vadd.f32 %v650, %v810
    %v812 = vpop.f32.mrf.mxu0
    %v813 = vpop.f32.mrf.mxu0
    %v814 = vadd.f32 %v653, %v813
    %v815 = vpop.f32.mrf.mxu0
    %816 = vmatprep.mubr.bf16.mxu0 %v238
    %817 = vmatmul.mubr.bf16.gmra.mxu0 %v237
    %v818 = vpop.f32.mrf.mxu0
    %v819 = vadd.f32 %v658, %v818
    %v820 = vpop.f32.mrf.mxu0
    %v821 = vpop.f32.mrf.mxu0
    %v822 = vadd.f32 %v661, %v821
    %v823 = vpop.f32.mrf.mxu0
    %824 = vmatprep.mubr.bf16.mxu0 %v242
    %825 = vmatmul.mubr.bf16.gmra.mxu0 %v241
    %v826 = vpop.f32.mrf.mxu0
    %v827 = vadd.f32 %v666, %v826
    %v828 = vpop.f32.mrf.mxu0
    %v829 = vpop.f32.mrf.mxu0
    %v830 = vadd.f32 %v669, %v829
    %v831 = vpop.f32.mrf.mxu0
    %832 = vmatprep.mubr.bf16.mxu0 %v246
    %833 = vmatmul.mubr.bf16.gmra.mxu0 %v245
    %v834 = vpop.f32.mrf.mxu0
    %v835 = vadd.f32 %v674, %v834
    %v836 = vpop.f32.mrf.mxu0
    %v837 = vpop.f32.mrf.mxu0
    %v838 = vadd.f32 %v677, %v837
    %v839 = vpop.f32.mrf.mxu0
    %840 = vmatprep.mubr.bf16.mxu0 %v250
    %841 = vmatmul.mubr.bf16.gmra.mxu0 %v249
    %v842 = vpop.f32.mrf.mxu0
    %v843 = vadd.f32 %v682, %v842
    %v844 = vpop.f32.mrf.mxu0
    %v845 = vpop.f32.mrf.mxu0
    %v846 = vadd.f32 %v685, %v845
    %v847 = vpop.f32.mrf.mxu0
    %848 = vmatprep.mubr.bf16.mxu0 %v254
    %849 = vmatmul.mubr.bf16.gmra.mxu0 %v253
    %v850 = vpop.f32.mrf.mxu0
    %v851 = vadd.f32 %v690, %v850
    %v852 = vpop.f32.mrf.mxu0
    %v853 = vpop.f32.mrf.mxu0
    %v854 = vadd.f32 %v693, %v853
    %v855 = vpop.f32.mrf.mxu0
    %856 = vdwg.mxu0
    %v857 = vmax.f32 %v731, 0.0
    %v858 = vmax.f32 %v734, 0.0
    %v859 = vmax.f32 %v739, 0.0
    %v860 = vmax.f32 %v742, 0.0
    %v861 = vmax.f32 %v747, 0.0
    %v862 = vmax.f32 %v750, 0.0
    %v863 = vmax.f32 %v755, 0.0
    %v864 = vmax.f32 %v758, 0.0
    %v865 = vmax.f32 %v763, 0.0
    %v866 = vmax.f32 %v766, 0.0
    %v867 = vmax.f32 %v771, 0.0
    %v868 = vmax.f32 %v774, 0.0
    %v869 = vmax.f32 %v779, 0.0
    %v870 = vmax.f32 %v782, 0.0
    %v871 = vmax.f32 %v787, 0.0
    %v872 = vmax.f32 %v790, 0.0
    %v873 = vmax.f32 %v795, 0.0
    %v874 = vmax.f32 %v798, 0.0
    %v875 = vmax.f32 %v803, 0.0
    %v876 = vmax.f32 %v806, 0.0
    %v877 = vmax.f32 %v811, 0.0
    %v878 = vmax.f32 %v814, 0.0
    %v879 = vmax.f32 %v819, 0.0
    %v880 = vmax.f32 %v822, 0.0
    %v881 = vmax.f32 %v827, 0.0
    %v882 = vmax.f32 %v830, 0.0
    %v883 = vmax.f32 %v835, 0.0
    %v884 = vmax.f32 %v838, 0.0
    %v885 = vmax.f32 %v843, 0.0
    %v886 = vmax.f32 %v846, 0.0
    %v887 = vmax.f32 %v851, 0.0
    %v888 = vmax.f32 %v854, 0.0
    %v889 = vpack.c.bf16 %v858, %v857
    %v890 = vpack.c.bf16 %v860, %v859
    %v891 = vpack.c.bf16 %v862, %v861
    %v892 = vpack.c.bf16 %v864, %v863
    %v893 = vpack.c.bf16 %v866, %v865
    %v894 = vpack.c.bf16 %v868, %v867
    %v895 = vpack.c.bf16 %v870, %v869
    %v896 = vpack.c.bf16 %v872, %v871
    %v897 = vpack.c.bf16 %v874, %v873
    %v898 = vpack.c.bf16 %v876, %v875
    %v899 = vpack.c.bf16 %v878, %v877
    %v900 = vpack.c.bf16 %v880, %v879
    %v901 = vpack.c.bf16 %v882, %v881
    %v902 = vpack.c.bf16 %v884, %v883
    %v903 = vpack.c.bf16 %v886, %v885
    %v904 = vpack.c.bf16 %v888, %v887
    %v906 = vlaneseq
    %v907 = vshrl.u32 %v906, 7
    %v908 = vsub.s32 0, %v907
    %v909 = vrot.slane %v336, %v908
    %v927 = vunpack.c.l.b16 %v320
    %v928 = vunpack.c.l.b16 %v321
    %v929 = vunpack.c.l.b16 %v322
    %v930 = vunpack.c.l.b16 %v323
    %v931 = vunpack.c.l.b16 %v324
    %v932 = vunpack.c.l.b16 %v325
    %v933 = vunpack.c.l.b16 %v326
    %v934 = vunpack.c.l.b16 %v327
    %v935 = vunpack.c.l.b16 %v328
    %v936 = vunpack.c.l.b16 %v329
    %v937 = vunpack.c.l.b16 %v330
    %v938 = vunpack.c.l.b16 %v331
    %v939 = vunpack.c.l.b16 %v332
    %v940 = vunpack.c.l.b16 %v333
    %v941 = vunpack.c.l.b16 %v334
    %v942 = vunpack.c.l.b16 %v335
    %v943 = vpack.c.b16 %v928, %v927
    %v944 = vpack.c.b16 %v930, %v929
    %v945 = vpack.c.b16 %v932, %v931
    %v946 = vpack.c.b16 %v934, %v933
    %v947 = vpack.c.b16 %v936, %v935
    %v948 = vpack.c.b16 %v938, %v937
    %v949 = vpack.c.b16 %v940, %v939
    %v950 = vpack.c.b16 %v942, %v941
    %959 = vmatprep.subr.bf16.mxu0 0
    %960 = vmatpush1.bf16.msra.mxu0 %v950
    %961 = vmatprep.subr.bf16.mxu0 0
    %962 = vmatpush1.bf16.msra.mxu0 %v949
    %963 = vmatprep.subr.bf16.mxu0 0
    %964 = vmatpush1.bf16.msra.mxu0 %v948
    %965 = vmatprep.subr.bf16.mxu0 0
    %966 = vmatpush1.bf16.msra.mxu0 %v947
    %967 = vmatprep.subr.bf16.mxu0 0
    %968 = vmatpush1.bf16.msra.mxu0 %v946
    %969 = vmatprep.subr.bf16.mxu0 0
    %970 = vmatpush1.bf16.msra.mxu0 %v945
    %971 = vmatprep.subr.bf16.mxu0 0
    %972 = vmatpush1.bf16.msra.mxu0 %v944
    %973 = vmatprep.subr.bf16.mxu0 0
    %974 = vmatpush1.bf16.msra.mxu0 %v943
    %975 = vmatprep.subr.bf16.mxu0 0
    %976 = vmatpush2.bf16.msra.mxu0 0
    %977 = vmatprep.subr.bf16.mxu0 0
    %978 = vmatpush2.bf16.msra.mxu0 0
    %979 = vmatprep.subr.bf16.mxu0 0
    %980 = vmatpush2.bf16.msra.mxu0 0
    %981 = vmatprep.subr.bf16.mxu0 0
    %982 = vmatpush2.bf16.msra.mxu0 0
    %983 = vmatprep.subr.bf16.mxu0 0
    %984 = vmatpush2.bf16.msra.mxu0 0
    %985 = vmatprep.subr.bf16.mxu0 0
    %986 = vmatpush2.bf16.msra.mxu0 0
    %987 = vmatprep.subr.bf16.mxu0 0
    %988 = vmatpush2.bf16.msra.mxu0 0
    %989 = vmatprep.subr.bf16.mxu0 0
    %990 = vmatpush2.bf16.msra.mxu0 0
    %991 = vmatprep.mubr.bf16.mxu0 0
    %992 = vmatmul.mubr.bf16.gmra.mxu0 %v889
    %v993 = vpop.f32.mrf.mxu0
    %v994 = vadd.f32 %v909, %v993
    %v995 = vpop.f32.mrf.mxu0
    %v996 = vpop.f32.mrf.mxu0
    %v997 = vadd.f32 %v909, %v996
    %v998 = vpop.f32.mrf.mxu0
    %999 = vmatprep.mubr.bf16.mxu0 0
    %1000 = vmatmul.mubr.bf16.gmra.mxu0 %v890
    %v1001 = vpop.f32.mrf.mxu0
    %v1002 = vadd.f32 %v909, %v1001
    %v1003 = vpop.f32.mrf.mxu0
    %v1004 = vpop.f32.mrf.mxu0
    %v1005 = vadd.f32 %v909, %v1004
    %v1006 = vpop.f32.mrf.mxu0
    %1007 = vmatprep.mubr.bf16.mxu0 0
    %1008 = vmatmul.mubr.bf16.gmra.mxu0 %v891
    %v1009 = vpop.f32.mrf.mxu0
    %v1010 = vadd.f32 %v909, %v1009
    %v1011 = vpop.f32.mrf.mxu0
    %v1012 = vpop.f32.mrf.mxu0
    %v1013 = vadd.f32 %v909, %v1012
    %v1014 = vpop.f32.mrf.mxu0
    %1015 = vmatprep.mubr.bf16.mxu0 0
    %1016 = vmatmul.mubr.bf16.gmra.mxu0 %v892
    %v1017 = vpop.f32.mrf.mxu0
    %v1018 = vadd.f32 %v909, %v1017
    %v1019 = vpop.f32.mrf.mxu0
    %v1020 = vpop.f32.mrf.mxu0
    %v1021 = vadd.f32 %v909, %v1020
    %v1022 = vpop.f32.mrf.mxu0
    %1023 = vmatprep.mubr.bf16.mxu0 0
    %1024 = vmatmul.mubr.bf16.gmra.mxu0 %v893
    %v1025 = vpop.f32.mrf.mxu0
    %v1026 = vadd.f32 %v909, %v1025
    %v1027 = vpop.f32.mrf.mxu0
    %v1028 = vpop.f32.mrf.mxu0
    %v1029 = vadd.f32 %v909, %v1028
    %v1030 = vpop.f32.mrf.mxu0
    %1031 = vmatprep.mubr.bf16.mxu0 0
    %1032 = vmatmul.mubr.bf16.gmra.mxu0 %v894
    %v1033 = vpop.f32.mrf.mxu0
    %v1034 = vadd.f32 %v909, %v1033
    %v1035 = vpop.f32.mrf.mxu0
    %v1036 = vpop.f32.mrf.mxu0
    %v1037 = vadd.f32 %v909, %v1036
    %v1038 = vpop.f32.mrf.mxu0
    %1039 = vmatprep.mubr.bf16.mxu0 0
    %1040 = vmatmul.mubr.bf16.gmra.mxu0 %v895
    %v1041 = vpop.f32.mrf.mxu0
    %v1042 = vadd.f32 %v909, %v1041
    %v1043 = vpop.f32.mrf.mxu0
    %v1044 = vpop.f32.mrf.mxu0
    %v1045 = vadd.f32 %v909, %v1044
    %v1046 = vpop.f32.mrf.mxu0
    %1047 = vmatprep.mubr.bf16.mxu0 0
    %1048 = vmatmul.mubr.bf16.gmra.mxu0 %v896
    %v1049 = vpop.f32.mrf.mxu0
    %v1050 = vadd.f32 %v909, %v1049
    %v1051 = vpop.f32.mrf.mxu0
    %v1052 = vpop.f32.mrf.mxu0
    %v1053 = vadd.f32 %v909, %v1052
    %v1054 = vpop.f32.mrf.mxu0
    %1055 = vmatprep.mubr.bf16.mxu0 0
    %1056 = vmatmul.mubr.bf16.gmra.mxu0 %v897
    %v1057 = vpop.f32.mrf.mxu0
    %v1058 = vadd.f32 %v909, %v1057
    %v1059 = vpop.f32.mrf.mxu0
    %v1060 = vpop.f32.mrf.mxu0
    %v1061 = vadd.f32 %v909, %v1060
    %v1062 = vpop.f32.mrf.mxu0
    %1063 = vmatprep.mubr.bf16.mxu0 0
    %1064 = vmatmul.mubr.bf16.gmra.mxu0 %v898
    %v1065 = vpop.f32.mrf.mxu0
    %v1066 = vadd.f32 %v909, %v1065
    %v1067 = vpop.f32.mrf.mxu0
    %v1068 = vpop.f32.mrf.mxu0
    %v1069 = vadd.f32 %v909, %v1068
    %v1070 = vpop.f32.mrf.mxu0
    %1071 = vmatprep.mubr.bf16.mxu0 0
    %1072 = vmatmul.mubr.bf16.gmra.mxu0 %v899
    %v1073 = vpop.f32.mrf.mxu0
    %v1074 = vadd.f32 %v909, %v1073
    %v1075 = vpop.f32.mrf.mxu0
    %v1076 = vpop.f32.mrf.mxu0
    %v1077 = vadd.f32 %v909, %v1076
    %v1078 = vpop.f32.mrf.mxu0
    %1079 = vmatprep.mubr.bf16.mxu0 0
    %1080 = vmatmul.mubr.bf16.gmra.mxu0 %v900
    %v1081 = vpop.f32.mrf.mxu0
    %v1082 = vadd.f32 %v909, %v1081
    %v1083 = vpop.f32.mrf.mxu0
    %v1084 = vpop.f32.mrf.mxu0
    %v1085 = vadd.f32 %v909, %v1084
    %v1086 = vpop.f32.mrf.mxu0
    %1087 = vmatprep.mubr.bf16.mxu0 0
    %1088 = vmatmul.mubr.bf16.gmra.mxu0 %v901
    %v1089 = vpop.f32.mrf.mxu0
    %v1090 = vadd.f32 %v909, %v1089
    %v1091 = vpop.f32.mrf.mxu0
    %v1092 = vpop.f32.mrf.mxu0
    %v1093 = vadd.f32 %v909, %v1092
    %v1094 = vpop.f32.mrf.mxu0
    %1095 = vmatprep.mubr.bf16.mxu0 0
    %1096 = vmatmul.mubr.bf16.gmra.mxu0 %v902
    %v1097 = vpop.f32.mrf.mxu0
    %v1098 = vadd.f32 %v909, %v1097
    %v1099 = vpop.f32.mrf.mxu0
    %v1100 = vpop.f32.mrf.mxu0
    %v1101 = vadd.f32 %v909, %v1100
    %v1102 = vpop.f32.mrf.mxu0
    %1103 = vmatprep.mubr.bf16.mxu0 0
    %1104 = vmatmul.mubr.bf16.gmra.mxu0 %v903
    %v1105 = vpop.f32.mrf.mxu0
    %v1106 = vadd.f32 %v909, %v1105
    %v1107 = vpop.f32.mrf.mxu0
    %v1108 = vpop.f32.mrf.mxu0
    %v1109 = vadd.f32 %v909, %v1108
    %v1110 = vpop.f32.mrf.mxu0
    %1111 = vmatprep.mubr.bf16.mxu0 0
    %1112 = vmatmul.mubr.bf16.gmra.mxu0 %v904
    %v1113 = vpop.f32.mrf.mxu0
    %v1114 = vadd.f32 %v909, %v1113
    %v1115 = vpop.f32.mrf.mxu0
    %v1116 = vpop.f32.mrf.mxu0
    %v1117 = vadd.f32 %v909, %v1116
    %v1118 = vpop.f32.mrf.mxu0
    %1119 = vdwg.mxu0
    %1120 = vmax.xlane.f32.xlu0 %v994
    %v1121 = vpop.xlane.xlu0 %1120
    %1122 = vmax.xlane.f32.xlu0 %v997
    %v1123 = vpop.xlane.xlu0 %1122
    %1124 = vmax.xlane.f32.xlu0 %v1002
    %v1125 = vpop.xlane.xlu0 %1124
    %1126 = vmax.xlane.f32.xlu0 %v1005
    %v1127 = vpop.xlane.xlu0 %1126
    %1128 = vmax.xlane.f32.xlu0 %v1010
    %v1129 = vpop.xlane.xlu0 %1128
    %1130 = vmax.xlane.f32.xlu0 %v1013
    %v1131 = vpop.xlane.xlu0 %1130
    %1132 = vmax.xlane.f32.xlu0 %v1018
    %v1133 = vpop.xlane.xlu0 %1132
    %1134 = vmax.xlane.f32.xlu0 %v1021
    %v1135 = vpop.xlane.xlu0 %1134
    %1136 = vmax.xlane.f32.xlu0 %v1026
    %v1137 = vpop.xlane.xlu0 %1136
    %1138 = vmax.xlane.f32.xlu0 %v1029
    %v1139 = vpop.xlane.xlu0 %1138
    %1140 = vmax.xlane.f32.xlu0 %v1034
    %v1141 = vpop.xlane.xlu0 %1140
    %1142 = vmax.xlane.f32.xlu0 %v1037
    %v1143 = vpop.xlane.xlu0 %1142
    %1144 = vmax.xlane.f32.xlu0 %v1042
    %v1145 = vpop.xlane.xlu0 %1144
    %1146 = vmax.xlane.f32.xlu0 %v1045
    %v1147 = vpop.xlane.xlu0 %1146
    %1148 = vmax.xlane.f32.xlu0 %v1050
    %v1149 = vpop.xlane.xlu0 %1148
    %1150 = vmax.xlane.f32.xlu0 %v1053
    %v1151 = vpop.xlane.xlu0 %1150
    %1152 = vmax.xlane.f32.xlu0 %v1058
    %v1153 = vpop.xlane.xlu0 %1152
    %1154 = vmax.xlane.f32.xlu0 %v1061
    %v1155 = vpop.xlane.xlu0 %1154
    %1156 = vmax.xlane.f32.xlu0 %v1066
    %v1157 = vpop.xlane.xlu0 %1156
    %1158 = vmax.xlane.f32.xlu0 %v1069
    %v1159 = vpop.xlane.xlu0 %1158
    %1160 = vmax.xlane.f32.xlu0 %v1074
    %v1161 = vpop.xlane.xlu0 %1160
    %1162 = vmax.xlane.f32.xlu0 %v1077
    %v1163 = vpop.xlane.xlu0 %1162
    %1164 = vmax.xlane.f32.xlu0 %v1082
    %v1165 = vpop.xlane.xlu0 %1164
    %1166 = vmax.xlane.f32.xlu0 %v1085
    %v1167 = vpop.xlane.xlu0 %1166
    %1168 = vmax.xlane.f32.xlu0 %v1090
    %v1169 = vpop.xlane.xlu0 %1168
    %1170 = vmax.xlane.f32.xlu0 %v1093
    %v1171 = vpop.xlane.xlu0 %1170
    %1172 = vmax.xlane.f32.xlu0 %v1098
    %v1173 = vpop.xlane.xlu0 %1172
    %1174 = vmax.xlane.f32.xlu0 %v1101
    %v1175 = vpop.xlane.xlu0 %1174
    %1176 = vmax.xlane.f32.xlu0 %v1106
    %v1177 = vpop.xlane.xlu0 %1176
    %1178 = vmax.xlane.f32.xlu0 %v1109
    %v1179 = vpop.xlane.xlu0 %1178
    %1180 = vmax.xlane.f32.xlu0 %v1114
    %v1181 = vpop.xlane.xlu0 %1180
    %1182 = vmax.xlane.f32.xlu0 %v1117
    %v1183 = vpop.xlane.xlu0 %1182
    %v1184 = vsub.f32 %v994, %v1121
    %v1185 = vsub.f32 %v997, %v1123
    %v1186 = vsub.f32 %v1002, %v1125
    %v1187 = vsub.f32 %v1005, %v1127
    %v1188 = vsub.f32 %v1010, %v1129
    %v1189 = vsub.f32 %v1013, %v1131
    %v1190 = vsub.f32 %v1018, %v1133
    %v1191 = vsub.f32 %v1021, %v1135
    %v1192 = vsub.f32 %v1026, %v1137
    %v1193 = vsub.f32 %v1029, %v1139
    %v1194 = vsub.f32 %v1034, %v1141
    %v1195 = vsub.f32 %v1037, %v1143
    %v1196 = vsub.f32 %v1042, %v1145
    %v1197 = vsub.f32 %v1045, %v1147
    %v1198 = vsub.f32 %v1050, %v1149
    %v1199 = vsub.f32 %v1053, %v1151
    %v1200 = vsub.f32 %v1058, %v1153
    %v1201 = vsub.f32 %v1061, %v1155
    %v1202 = vsub.f32 %v1066, %v1157
    %v1203 = vsub.f32 %v1069, %v1159
    %v1204 = vsub.f32 %v1074, %v1161
    %v1205 = vsub.f32 %v1077, %v1163
    %v1206 = vsub.f32 %v1082, %v1165
    %v1207 = vsub.f32 %v1085, %v1167
    %v1208 = vsub.f32 %v1090, %v1169
    %v1209 = vsub.f32 %v1093, %v1171
    %v1210 = vsub.f32 %v1098, %v1173
    %v1211 = vsub.f32 %v1101, %v1175
    %v1212 = vsub.f32 %v1106, %v1177
    %v1213 = vsub.f32 %v1109, %v1179
    %v1214 = vsub.f32 %v1114, %v1181
    %v1215 = vsub.f32 %v1117, %v1183
    %v1216 = vmul.f32 %v1184, 1.442695
    %v1217 = vpow.pop %v1216
    %v1218 = vmul.f32 %v1185, 1.442695
    %v1219 = vpow.pop %v1218
    %v1220 = vmul.f32 %v1186, 1.442695
    %v1221 = vpow.pop %v1220
    %v1222 = vmul.f32 %v1187, 1.442695
    %v1223 = vpow.pop %v1222
    %v1224 = vmul.f32 %v1188, 1.442695
    %v1225 = vpow.pop %v1224
    %v1226 = vmul.f32 %v1189, 1.442695
    %v1227 = vpow.pop %v1226
    %v1228 = vmul.f32 %v1190, 1.442695
    %v1229 = vpow.pop %v1228
    %v1230 = vmul.f32 %v1191, 1.442695
    %v1231 = vpow.pop %v1230
    %v1232 = vmul.f32 %v1192, 1.442695
    %v1233 = vpow.pop %v1232
    %v1234 = vmul.f32 %v1193, 1.442695
    %v1235 = vpow.pop %v1234
    %v1236 = vmul.f32 %v1194, 1.442695
    %v1237 = vpow.pop %v1236
    %v1238 = vmul.f32 %v1195, 1.442695
    %v1239 = vpow.pop %v1238
    %v1240 = vmul.f32 %v1196, 1.442695
    %v1241 = vpow.pop %v1240
    %v1242 = vmul.f32 %v1197, 1.442695
    %v1243 = vpow.pop %v1242
    %v1244 = vmul.f32 %v1198, 1.442695
    %v1245 = vpow.pop %v1244
    %v1246 = vmul.f32 %v1199, 1.442695
    %v1247 = vpow.pop %v1246
    %v1248 = vmul.f32 %v1200, 1.442695
    %v1249 = vpow.pop %v1248
    %v1250 = vmul.f32 %v1201, 1.442695
    %v1251 = vpow.pop %v1250
    %v1252 = vmul.f32 %v1202, 1.442695
    %v1253 = vpow.pop %v1252
    %v1254 = vmul.f32 %v1203, 1.442695
    %v1255 = vpow.pop %v1254
    %v1256 = vmul.f32 %v1204, 1.442695
    %v1257 = vpow.pop %v1256
    %v1258 = vmul.f32 %v1205, 1.442695
    %v1259 = vpow.pop %v1258
    %v1260 = vmul.f32 %v1206, 1.442695
    %v1261 = vpow.pop %v1260
    %v1262 = vmul.f32 %v1207, 1.442695
    %v1263 = vpow.pop %v1262
    %v1264 = vmul.f32 %v1208, 1.442695
    %v1265 = vpow.pop %v1264
    %v1266 = vmul.f32 %v1209, 1.442695
    %v1267 = vpow.pop %v1266
    %v1268 = vmul.f32 %v1210, 1.442695
    %v1269 = vpow.pop %v1268
    %v1270 = vmul.f32 %v1211, 1.442695
    %v1271 = vpow.pop %v1270
    %v1272 = vmul.f32 %v1212, 1.442695
    %v1273 = vpow.pop %v1272
    %v1274 = vmul.f32 %v1213, 1.442695
    %v1275 = vpow.pop %v1274
    %v1276 = vmul.f32 %v1214, 1.442695
    %v1277 = vpow.pop %v1276
    %v1278 = vmul.f32 %v1215, 1.442695
    %v1279 = vpow.pop %v1278
    %1280 = vadd.xlane.f32.xlu0 %v1217
    %v1281 = vpop.xlane.xlu0 %1280
    %1282 = vadd.xlane.f32.xlu0 %v1219
    %v1283 = vpop.xlane.xlu0 %1282
    %1284 = vadd.xlane.f32.xlu0 %v1221
    %v1285 = vpop.xlane.xlu0 %1284
    %1286 = vadd.xlane.f32.xlu0 %v1223
    %v1287 = vpop.xlane.xlu0 %1286
    %1288 = vadd.xlane.f32.xlu0 %v1225
    %v1289 = vpop.xlane.xlu0 %1288
    %1290 = vadd.xlane.f32.xlu0 %v1227
    %v1291 = vpop.xlane.xlu0 %1290
    %1292 = vadd.xlane.f32.xlu0 %v1229
    %v1293 = vpop.xlane.xlu0 %1292
    %1294 = vadd.xlane.f32.xlu0 %v1231
    %v1295 = vpop.xlane.xlu0 %1294
    %1296 = vadd.xlane.f32.xlu0 %v1233
    %v1297 = vpop.xlane.xlu0 %1296
    %1298 = vadd.xlane.f32.xlu0 %v1235
    %v1299 = vpop.xlane.xlu0 %1298
    %1300 = vadd.xlane.f32.xlu0 %v1237
    %v1301 = vpop.xlane.xlu0 %1300
    %1302 = vadd.xlane.f32.xlu0 %v1239
    %v1303 = vpop.xlane.xlu0 %1302
    %1304 = vadd.xlane.f32.xlu0 %v1241
    %v1305 = vpop.xlane.xlu0 %1304
    %1306 = vadd.xlane.f32.xlu0 %v1243
    %v1307 = vpop.xlane.xlu0 %1306
    %1308 = vadd.xlane.f32.xlu0 %v1245
    %v1309 = vpop.xlane.xlu0 %1308
    %1310 = vadd.xlane.f32.xlu0 %v1247
    %v1311 = vpop.xlane.xlu0 %1310
    %1312 = vadd.xlane.f32.xlu0 %v1249
    %v1313 = vpop.xlane.xlu0 %1312
    %1314 = vadd.xlane.f32.xlu0 %v1251
    %v1315 = vpop.xlane.xlu0 %1314
    %1316 = vadd.xlane.f32.xlu0 %v1253
    %v1317 = vpop.xlane.xlu0 %1316
    %1318 = vadd.xlane.f32.xlu0 %v1255
    %v1319 = vpop.xlane.xlu0 %1318
    %1320 = vadd.xlane.f32.xlu0 %v1257
    %v1321 = vpop.xlane.xlu0 %1320
    %1322 = vadd.xlane.f32.xlu0 %v1259
    %v1323 = vpop.xlane.xlu0 %1322
    %1324 = vadd.xlane.f32.xlu0 %v1261
    %v1325 = vpop.xlane.xlu0 %1324
    %1326 = vadd.xlane.f32.xlu0 %v1263
    %v1327 = vpop.xlane.xlu0 %1326
    %1328 = vadd.xlane.f32.xlu0 %v1265
    %v1329 = vpop.xlane.xlu0 %1328
    %1330 = vadd.xlane.f32.xlu0 %v1267
    %v1331 = vpop.xlane.xlu0 %1330
    %1332 = vadd.xlane.f32.xlu0 %v1269
    %v1333 = vpop.xlane.xlu0 %1332
    %1334 = vadd.xlane.f32.xlu0 %v1271
    %v1335 = vpop.xlane.xlu0 %1334
    %1336 = vadd.xlane.f32.xlu0 %v1273
    %v1337 = vpop.xlane.xlu0 %1336
    %1338 = vadd.xlane.f32.xlu0 %v1275
    %v1339 = vpop.xlane.xlu0 %1338
    %1340 = vadd.xlane.f32.xlu0 %v1277
    %v1341 = vpop.xlane.xlu0 %1340
    %1342 = vadd.xlane.f32.xlu0 %v1279
    %v1343 = vpop.xlane.xlu0 %1342
    %v1344 = vlog2.pop %v1281
    %v1345 = vmul.f32 %v1344, 0.6931472
    %v1346 = vlog2.pop %v1283
    %v1347 = vmul.f32 %v1346, 0.6931472
    %v1348 = vlog2.pop %v1285
    %v1349 = vmul.f32 %v1348, 0.6931472
    %v1350 = vlog2.pop %v1287
    %v1351 = vmul.f32 %v1350, 0.6931472
    %v1352 = vlog2.pop %v1289
    %v1353 = vmul.f32 %v1352, 0.6931472
    %v1354 = vlog2.pop %v1291
    %v1355 = vmul.f32 %v1354, 0.6931472
    %v1356 = vlog2.pop %v1293
    %v1357 = vmul.f32 %v1356, 0.6931472
    %v1358 = vlog2.pop %v1295
    %v1359 = vmul.f32 %v1358, 0.6931472
    %v1360 = vlog2.pop %v1297
    %v1361 = vmul.f32 %v1360, 0.6931472
    %v1362 = vlog2.pop %v1299
    %v1363 = vmul.f32 %v1362, 0.6931472
    %v1364 = vlog2.pop %v1301
    %v1365 = vmul.f32 %v1364, 0.6931472
    %v1366 = vlog2.pop %v1303
    %v1367 = vmul.f32 %v1366, 0.6931472
    %v1368 = vlog2.pop %v1305
    %v1369 = vmul.f32 %v1368, 0.6931472
    %v1370 = vlog2.pop %v1307
    %v1371 = vmul.f32 %v1370, 0.6931472
    %v1372 = vlog2.pop %v1309
    %v1373 = vmul.f32 %v1372, 0.6931472
    %v1374 = vlog2.pop %v1311
    %v1375 = vmul.f32 %v1374, 0.6931472
    %v1376 = vlog2.pop %v1313
    %v1377 = vmul.f32 %v1376, 0.6931472
    %v1378 = vlog2.pop %v1315
    %v1379 = vmul.f32 %v1378, 0.6931472
    %v1380 = vlog2.pop %v1317
    %v1381 = vmul.f32 %v1380, 0.6931472
    %v1382 = vlog2.pop %v1319
    %v1383 = vmul.f32 %v1382, 0.6931472
    %v1384 = vlog2.pop %v1321
    %v1385 = vmul.f32 %v1384, 0.6931472
    %v1386 = vlog2.pop %v1323
    %v1387 = vmul.f32 %v1386, 0.6931472
    %v1388 = vlog2.pop %v1325
    %v1389 = vmul.f32 %v1388, 0.6931472
    %v1390 = vlog2.pop %v1327
    %v1391 = vmul.f32 %v1390, 0.6931472
    %v1392 = vlog2.pop %v1329
    %v1393 = vmul.f32 %v1392, 0.6931472
    %v1394 = vlog2.pop %v1331
    %v1395 = vmul.f32 %v1394, 0.6931472
    %v1396 = vlog2.pop %v1333
    %v1397 = vmul.f32 %v1396, 0.6931472
    %v1398 = vlog2.pop %v1335
    %v1399 = vmul.f32 %v1398, 0.6931472
    %v1400 = vlog2.pop %v1337
    %v1401 = vmul.f32 %v1400, 0.6931472
    %v1402 = vlog2.pop %v1339
    %v1403 = vmul.f32 %v1402, 0.6931472
    %v1404 = vlog2.pop %v1341
    %v1405 = vmul.f32 %v1404, 0.6931472
    %v1406 = vlog2.pop %v1343
    %v1407 = vmul.f32 %v1406, 0.6931472
    %v1408 = vsub.f32 %v1184, %v1345
    %v1409 = vsub.f32 %v1185, %v1347
    %v1410 = vsub.f32 %v1186, %v1349
    %v1411 = vsub.f32 %v1187, %v1351
    %v1412 = vsub.f32 %v1188, %v1353
    %v1413 = vsub.f32 %v1189, %v1355
    %v1414 = vsub.f32 %v1190, %v1357
    %v1415 = vsub.f32 %v1191, %v1359
    %v1416 = vsub.f32 %v1192, %v1361
    %v1417 = vsub.f32 %v1193, %v1363
    %v1418 = vsub.f32 %v1194, %v1365
    %v1419 = vsub.f32 %v1195, %v1367
    %v1420 = vsub.f32 %v1196, %v1369
    %v1421 = vsub.f32 %v1197, %v1371
    %v1422 = vsub.f32 %v1198, %v1373
    %v1423 = vsub.f32 %v1199, %v1375
    %v1424 = vsub.f32 %v1200, %v1377
    %v1425 = vsub.f32 %v1201, %v1379
    %v1426 = vsub.f32 %v1202, %v1381
    %v1427 = vsub.f32 %v1203, %v1383
    %v1428 = vsub.f32 %v1204, %v1385
    %v1429 = vsub.f32 %v1205, %v1387
    %v1430 = vsub.f32 %v1206, %v1389
    %v1431 = vsub.f32 %v1207, %v1391
    %v1432 = vsub.f32 %v1208, %v1393
    %v1433 = vsub.f32 %v1209, %v1395
    %v1434 = vsub.f32 %v1210, %v1397
    %v1435 = vsub.f32 %v1211, %v1399
    %v1436 = vsub.f32 %v1212, %v1401
    %v1437 = vsub.f32 %v1213, %v1403
    %v1438 = vsub.f32 %v1214, %v1405
    %v1439 = vsub.f32 %v1215, %v1407
    %1440 = vst [vmem:[#allocation8] sm:$0xff] %v1408
    %1441 = vst [vmem:[#allocation8 + $0x8] sm:$0xff] %v1409
    %1442 = vst [vmem:[#allocation8 + $0x10] sm:$0xff] %v1410
    %1443 = vst [vmem:[#allocation8 + $0x18] sm:$0xff] %v1411
    %1444 = vst [vmem:[#allocation8 + $0x20] sm:$0xff] %v1412
    %1445 = vst [vmem:[#allocation8 + $0x28] sm:$0xff] %v1413
    %1446 = vst [vmem:[#allocation8 + $0x30] sm:$0xff] %v1414
    %1447 = vst [vmem:[#allocation8 + $0x38] sm:$0xff] %v1415
    %1448 = vst [vmem:[#allocation8 + $0x40] sm:$0xff] %v1416
    %1449 = vst [vmem:[#allocation8 + $0x48] sm:$0xff] %v1417
    %1450 = vst [vmem:[#allocation8 + $0x50] sm:$0xff] %v1418
    %1451 = vst [vmem:[#allocation8 + $0x58] sm:$0xff] %v1419
    %1452 = vst [vmem:[#allocation8 + $0x60] sm:$0xff] %v1420
    %1453 = vst [vmem:[#allocation8 + $0x68] sm:$0xff] %v1421
    %1454 = vst [vmem:[#allocation8 + $0x70] sm:$0xff] %v1422
    %1455 = vst [vmem:[#allocation8 + $0x78] sm:$0xff] %v1423
    %1456 = vst [vmem:[#allocation8 + $0x80] sm:$0xff] %v1424
    %1457 = vst [vmem:[#allocation8 + $0x88] sm:$0xff] %v1425
    %1458 = vst [vmem:[#allocation8 + $0x90] sm:$0xff] %v1426
    %1459 = vst [vmem:[#allocation8 + $0x98] sm:$0xff] %v1427
    %1460 = vst [vmem:[#allocation8 + $0xa0] sm:$0xff] %v1428
    %1461 = vst [vmem:[#allocation8 + $0xa8] sm:$0xff] %v1429
    %1462 = vst [vmem:[#allocation8 + $0xb0] sm:$0xff] %v1430
    %1463 = vst [vmem:[#allocation8 + $0xb8] sm:$0xff] %v1431
    %1464 = vst [vmem:[#allocation8 + $0xc0] sm:$0xff] %v1432
    %1465 = vst [vmem:[#allocation8 + $0xc8] sm:$0xff] %v1433
    %1466 = vst [vmem:[#allocation8 + $0xd0] sm:$0xff] %v1434
    %1467 = vst [vmem:[#allocation8 + $0xd8] sm:$0xff] %v1435
    %1468 = vst [vmem:[#allocation8 + $0xe0] sm:$0xff] %v1436
    %1469 = vst [vmem:[#allocation8 + $0xe8] sm:$0xff] %v1437
    %1470 = vst [vmem:[#allocation8 + $0xf0] sm:$0xff] %v1438
    %1471 = vst [vmem:[#allocation8 + $0xf8] sm:$0xff] %v1439
    // Predicated region
    $region34: #{tpu_custom_call.1} parent=1 // pred_check
      _
    $region35: #{tpu_custom_call.1} parent=1 // pred_check_branch
      %1473 = sbr.rel (0) target = $region37
    $region36: #{tpu_custom_call.1} parent=1 // pred_region
      %s1475 = ssub.s32 4096, 4096
      %1476 = vsyncadd [#allocation4], %s1475
      %s1477 = sshll.u32 [#allocation8], 4
      %s1478 = int_to_ptr.vmem [resolvable:$true] %s1477
      %1483 = dma.vmem_to_hbm [thread:$0]  %s1478, 4096, %s5, [#allocation4], 128, 128, 8
    $region37: #{tpu_custom_call.1} parent=1 // pred_fallthru
      _
    // Predicated region
    $region38: #{tpu_custom_call.1} parent=1 // pred_check
      _
    $region39: #{tpu_custom_call.1} parent=1 // pred_check_branch
      %1485 = sbr.rel (0) target = $region41
    $region40: #{tpu_custom_call.1} parent=1 // pred_region
      %1486 = dma.done [#allocation4], 4096
    $region41: #{tpu_custom_call.1} parent=1 // pred_fallthru
      _
    %1487 = vsyncpa [#allocation3], 1
    %1488 = vsyncpa [#allocation6], 1
    %1489 = vsyncpa [#allocation4], 1

</llo_original>
